<compile_context>
chip_gen: v6e
topology: v6e:2x2x1
jax: 0.10.0
libtpu: 0.0.40
codegen_flags: <defaults>
</compile_context>

<pallas_src>
import functools

import jax
import jax.numpy as jnp
from jax.experimental import pallas as pl
from jax.experimental.pallas import tpu as pltpu

NEG_SLOPE = 0.01   # nn.LeakyReLU default
LN_EPS = 1e-5      # nn.LayerNorm default


def _ln_lrelu(y, gamma, beta):
    """LayerNorm over the last axis -> LeakyReLU, all in f32.

    Variance computed as E[y^2] - mu^2 so the two reductions are independent
    and can overlap on the XLU (perf review item 4)."""
    mu = jnp.mean(y, axis=-1, keepdims=True)
    m2 = jnp.mean(y * y, axis=-1, keepdims=True)
    var = m2 - mu * mu
    z = (y - mu) * jax.lax.rsqrt(var + LN_EPS)
    z = z * gamma + beta
    return jnp.where(z >= 0.0, z, NEG_SLOPE * z)


def ac_kernel(x_ref, wt_ref, wh_ref, v_ref, out_ref):
    """Whole forward pass for one batch tile.

    x_ref  : (TB, P)      bf16  observation zero-padded to P = max(in_dim, H)
    wt_ref : (4, P, H)    bf16  trunk weights (layer 0 = input layer, padded)
    wh_ref : (4, 2H, 2H)  bf16  fused actor|critic head weights + output proj
    v_ref  : (8, 3, 2H)   f32   [bias, gamma, beta] per layer (trunk uses :H)
    out_ref: (TB, 2H)     f32   [policy | value | zeros]
    """
    n_trunk = wt_ref.shape[0]
    n_head = wh_ref.shape[0] - 1
    P = wt_ref.shape[1]
    H = wt_ref.shape[2]
    TB = x_ref.shape[0]
    bf16 = jnp.bfloat16
    f32 = jnp.float32

    # ---- FC trunk: 4 x (Linear -> LayerNorm -> LeakyReLU), width H ----
    h = x_ref[...]                                        # (TB, P) bf16
    for l in range(n_trunk):
        v = v_ref[l]                                      # (3, 2H) f32
        y = jnp.dot(h, wt_ref[l], preferred_element_type=f32) + v[0:1, :H]
        z = _ln_lrelu(y, v[1:2, :H], v[2:3, :H])          # (TB, H) f32
        h = z.astype(bf16)
        if P > H and l + 1 < n_trunk:
            # next stacked weight expects a (TB, P) operand; zero-pad
            h = jnp.concatenate([h, jnp.zeros((TB, P - H), bf16)], axis=-1)

    # ---- fused actor|critic heads, width 2H ----
    # Head-layer-0 weight only has nonzero rows 0:H, so zero-pad the trunk
    # output up to 2H lanes; thereafter columns [:H]=actor, [H:]=critic.
    hh = jnp.concatenate([h, jnp.zeros((TB, H), bf16)], axis=-1)   # (TB, 2H)
    for i in range(n_head):
        v = v_ref[n_trunk + i]                            # (3, 2H) f32
        y = jnp.dot(hh, wh_ref[i], preferred_element_type=f32) + v[0:1, :]
        za = _ln_lrelu(y[:, :H], v[1:2, :H], v[2:3, :H])  # actor half
        zc = _ln_lrelu(y[:, H:], v[1:2, H:], v[2:3, H:])  # critic half
        hh = jnp.concatenate([za, zc], axis=-1).astype(bf16)

    # ---- fused output projections: columns = [policy | value | zeros] ----
    out = jnp.dot(hh, wh_ref[n_head], preferred_element_type=f32)
    out = out + v_ref[n_trunk + n_head, 0:1, :]
    out_ref[...] = out.astype(out_ref.dtype)


def pack_params(p):
    """Pack the 19 PyTorch-style parameter arrays into 3 stacked arrays
    (done once, off the forward path)."""
    H = p['g_fc'].shape[-1]
    in_dim = p['w_in'].shape[0]
    P = max(in_dim, H)
    NA = p['w_ao'].shape[-1]
    H2 = 2 * H
    f32, bf16 = jnp.float32, jnp.bfloat16

    # trunk weights: (4, P, H)  (zero rows where the real fan-in is smaller)
    wt = [jnp.zeros((P, H), f32).at[:in_dim, :].set(p['w_in'])]
    for i in range(3):
        wt.append(jnp.zeros((P, H), f32).at[:H, :].set(p['w_fc'][i]))
    w_trunk = jnp.stack(wt).astype(bf16)

    # head weights: (4, 2H, 2H)
    wh = []
    w = jnp.zeros((H2, H2), f32)            # layer 0: shared input, concat out
    w = w.at[:H, :H].set(p['w_a'][0]).at[:H, H:].set(p['w_c'][0])
    wh.append(w)
    for i in (1, 2):                        # layers 1-2: block-diagonal
        w = jnp.zeros((H2, H2), f32)
        w = w.at[:H, :H].set(p['w_a'][i]).at[H:, H:].set(p['w_c'][i])
        wh.append(w)
    w = jnp.zeros((H2, H2), f32)            # fused output projection
    w = w.at[:H, :NA].set(p['w_ao']).at[H:, NA:NA + 1].set(p['w_co'])
    wh.append(w)
    w_head = jnp.stack(wh).astype(bf16)

    # vectors: (8, 3, 2H) = [bias, gamma, beta] per layer
    v = jnp.zeros((8, 3, H2), f32)
    v = v.at[0, 0, :H].set(p['b_in'][0])
    for i in range(3):
        v = v.at[1 + i, 0, :H].set(p['b_fc'][i])
    for l in range(4):
        v = v.at[l, 1, :H].set(p['g_fc'][l]).at[l, 2, :H].set(p['be_fc'][l])
    for i in range(3):
        v = v.at[4 + i, 0, :H].set(p['b_a'][i]).at[4 + i, 0, H:].set(p['b_c'][i])
        v = v.at[4 + i, 1, :H].set(p['g_a'][i]).at[4 + i, 1, H:].set(p['g_c'][i])
        v = v.at[4 + i, 2, :H].set(p['be_a'][i]).at[4 + i, 2, H:].set(p['be_c'][i])
    v = v.at[7, 0, :NA].set(p['b_ao'][0]).at[7, 0, NA].set(p['b_co'][0, 0])
    return w_trunk, w_head, v


@functools.partial(jax.jit, static_argnames=("n_actions",))
def actor_critic_forward(x, w_trunk, w_head, v_all, *, n_actions):
    B, in_dim = x.shape
    P = w_trunk.shape[1]
    H2 = w_head.shape[-1]

    xb = x.astype(jnp.bfloat16)
    if in_dim < P:
        xb = jnp.concatenate(
            [xb, jnp.zeros((B, P - in_dim), jnp.bfloat16)], axis=-1)

    # Batch tile: full batch when small; otherwise an 8-aligned tile so the
    # grid can pipeline HBM traffic and shard across v7x's two TensorCores.
    tb = B
    for cand in (512, 256, 128, 64, 32, 16, 8):
        if B > cand and B % cand == 0:
            tb = cand
            break

    # NOTE(v7x): weights here are ~a hundred KB so VMEM is a non-issue; if H or
    # the batch tile is ever scaled up, set vmem_limit_bytes and re-derive the
    # tile against v7x's 64 MiB VMEM.
    out = pl.pallas_call(
        ac_kernel,
        out_shape=jax.ShapeDtypeStruct((B, H2), jnp.float32),
        grid=(B // tb,),
        in_specs=[
            pl.BlockSpec((tb, P), lambda i: (i, 0)),
            pl.BlockSpec(w_trunk.shape, lambda i: (0, 0, 0)),
            pl.BlockSpec(w_head.shape, lambda i: (0, 0, 0)),
            pl.BlockSpec(v_all.shape, lambda i: (0, 0, 0)),
        ],
        out_specs=pl.BlockSpec((tb, H2), lambda i: (i, 0)),
        compiler_params=pltpu.CompilerParams(
            dimension_semantics=("parallel",)),
    )(xb, w_trunk, w_head, v_all)

    policy = out[:, :n_actions]
    value = out[:, n_actions:n_actions + 1]
    return policy, value


def init_params(key, in_dim, H, n_actions):
    """PyTorch-style init: U(-1/sqrt(fan_in), 1/sqrt(fan_in)) for Linear
    weight/bias, ones/zeros for LayerNorm affine params."""
    keys = iter(jax.random.split(key, 64))

    def lin(fan_in, shape_w, shape_b):
        bound = 1.0 / (fan_in ** 0.5)
        w = jax.random.uniform(next(keys), shape_w, jnp.float32, -bound, bound)
        b = jax.random.uniform(next(keys), shape_b, jnp.float32, -bound, bound)
        return w, b

    p = {}
    p['w_in'], b_in = lin(in_dim, (in_dim, H), (H,))
    p['b_in'] = b_in[None, :]
    w_fc, b_fc = [], []
    for _ in range(3):
        w, b = lin(H, (H, H), (H,))
        w_fc.append(w); b_fc.append(b)
    p['w_fc'] = jnp.stack(w_fc); p['b_fc'] = jnp.stack(b_fc)
    p['g_fc'] = jnp.ones((4, H), jnp.float32)
    p['be_fc'] = jnp.zeros((4, H), jnp.float32)

    w_a, b_a = [], []
    for _ in range(3):
        w, b = lin(H, (H, H), (H,))
        w_a.append(w); b_a.append(b)
    p['w_a'] = jnp.stack(w_a); p['b_a'] = jnp.stack(b_a)
    p['g_a'] = jnp.ones((3, H), jnp.float32)
    p['be_a'] = jnp.zeros((3, H), jnp.float32)
    w_ao, b_ao = lin(H, (H, n_actions), (n_actions,))
    p['w_ao'] = w_ao; p['b_ao'] = b_ao[None, :]

    w_c, b_c = [], []
    for _ in range(3):
        w, b = lin(H, (H, H), (H,))
        w_c.append(w); b_c.append(b)
    p['w_c'] = jnp.stack(w_c); p['b_c'] = jnp.stack(b_c)
    p['g_c'] = jnp.ones((3, H), jnp.float32)
    p['be_c'] = jnp.zeros((3, H), jnp.float32)
    w_co, b_co = lin(H, (H, 1), (1,))
    p['w_co'] = w_co; p['b_co'] = b_co[None, :]
    return p


def reference_forward(x, p):
    """Pure-JAX f32 reference mirroring the PyTorch module exactly."""
    def blk(h, w, b, g, be):
        y = h @ w + b
        mu = y.mean(-1, keepdims=True)
        var = ((y - mu) ** 2).mean(-1, keepdims=True)
        y = (y - mu) / jnp.sqrt(var + LN_EPS) * g + be
        return jnp.where(y >= 0, y, NEG_SLOPE * y)

    h = blk(x, p['w_in'], p['b_in'][0], p['g_fc'][0], p['be_fc'][0])
    for i in range(3):
        h = blk(h, p['w_fc'][i], p['b_fc'][i], p['g_fc'][i + 1], p['be_fc'][i + 1])
    a = h
    for i in range(3):
        a = blk(a, p['w_a'][i], p['b_a'][i], p['g_a'][i], p['be_a'][i])
    policy = a @ p['w_ao'] + p['b_ao'][0]
    c = h
    for i in range(3):
        c = blk(c, p['w_c'][i], p['b_c'][i], p['g_c'][i], p['be_c'][i])
    value = c @ p['w_co'] + p['b_co'][0]
    return policy, value


if __name__ == "__main__":
    B, IN_DIM, H, N_ACTIONS = 8, 16, 32, 4   # input_dims=(16,), fc1_dims=32

    key = jax.random.PRNGKey(0)
    k_x, k_p = jax.random.split(key)
    x = jax.random.normal(k_x, (B, IN_DIM), jnp.float32)
    params = init_params(k_p, IN_DIM, H, N_ACTIONS)

    w_trunk, w_head, v_all = pack_params(params)
    policy, value = actor_critic_forward(x, w_trunk, w_head, v_all,
                                         n_actions=N_ACTIONS)
    jax.block_until_ready((policy, value))

    ref_policy, ref_value = reference_forward(x, params)
    assert policy.shape == (B, N_ACTIONS) and value.shape == (B, 1)
    # Tolerance accounts for bf16 MXU operands (f32 accumulation + per-layer
    # LayerNorm keep the drift small); real bugs produce O(0.1-1) errors.
    assert jnp.allclose(policy, ref_policy, rtol=5e-2, atol=5e-2)
    assert jnp.allclose(value, ref_value, rtol=5e-2, atol=5e-2)

    print("KERNEL_OK")
</pallas_src>

<mosaic_0001>
module attributes {stable_mosaic.version = 11 : i64} {
  func.func @ac_kernel(%arg0: i32, %arg1: memref<8x32xbf16, #tpu.memory_space<vmem>>, %arg2: memref<4x32x32xbf16, #tpu.memory_space<vmem>>, %arg3: memref<4x64x64xbf16, #tpu.memory_space<vmem>>, %arg4: memref<8x3x64xf32, #tpu.memory_space<vmem>>, %arg5: memref<8x64xf32, #tpu.memory_space<vmem>>) attributes {dimension_semantics = [#tpu.dimension_semantics<parallel>], iteration_bounds = array<i64: 1>, scalar_prefetch = 0 : i64, scratch_operands = 0 : i64, tpu.core_type = #tpu.core_type<tc>, window_params = [{transform_indices = @transform_0, window_bounds = array<i64: 8, 32>}, {pipeline_mode = #tpu.pipeline_mode<synchronous>, transform_indices = @transform_1, window_bounds = array<i64: 4, 32, 32>}, {pipeline_mode = #tpu.pipeline_mode<synchronous>, transform_indices = @transform_2, window_bounds = array<i64: 4, 64, 64>}, {pipeline_mode = #tpu.pipeline_mode<synchronous>, transform_indices = @transform_3, window_bounds = array<i64: 8, 3, 64>}, {transform_indices = @transform_4, window_bounds = array<i64: 8, 64>}]} {
    %c0 = arith.constant 0 : index
    %c0_0 = arith.constant 0 : index
    %0 = vector.load %arg1[%c0, %c0_0] : memref<8x32xbf16, #tpu.memory_space<vmem>>, vector<8x32xbf16>
    %c0_1 = arith.constant 0 : index
    %c0_2 = arith.constant 0 : index
    %c0_3 = arith.constant 0 : index
    %1 = vector.load %arg4[%c0_1, %c0_2, %c0_3] : memref<8x3x64xf32, #tpu.memory_space<vmem>>, vector<1x3x64xf32>
    %2 = vector.shape_cast %1 : vector<1x3x64xf32> to vector<3x64xf32>
    %c0_4 = arith.constant 0 : index
    %c0_5 = arith.constant 0 : index
    %c0_6 = arith.constant 0 : index
    %3 = vector.load %arg2[%c0_4, %c0_5, %c0_6] : memref<4x32x32xbf16, #tpu.memory_space<vmem>>, vector<1x32x32xbf16>
    %4 = vector.shape_cast %3 : vector<1x32x32xbf16> to vector<32x32xbf16>
    %cst = arith.constant dense<0.000000e+00> : vector<8x32xf32>
    %5 = tpu.matmul %0, %4, %cst {dimension_numbers = #tpu.dot_dimension_numbers<[1], [0], [0], [1], [0, 0, 1, 1], [], []>} : vector<8x32xbf16>, vector<32x32xbf16>, vector<8x32xf32> -> vector<8x32xf32>
    %6 = vector.extract_strided_slice %2 {offsets = [0, 0], sizes = [1, 32], strides = [1, 1]} : vector<3x64xf32> to vector<1x32xf32>
    %7 = vector.broadcast %6 : vector<1x32xf32> to vector<8x32xf32>
    %8 = arith.addf %5, %7 : vector<8x32xf32>
    %9 = vector.extract_strided_slice %2 {offsets = [1, 0], sizes = [1, 32], strides = [1, 1]} : vector<3x64xf32> to vector<1x32xf32>
    %10 = vector.extract_strided_slice %2 {offsets = [2, 0], sizes = [1, 32], strides = [1, 1]} : vector<3x64xf32> to vector<1x32xf32>
    %cst_7 = arith.constant dense<0.000000e+00> : vector<8xf32>
    %11 = vector.multi_reduction <add>, %8, %cst_7 [1] : vector<8x32xf32> to vector<8xf32>
    %12 = vector.shape_cast %11 : vector<8xf32> to vector<8x1xf32>
    %cst_8 = arith.constant 3.200000e+01 : f32
    %13 = vector.broadcast %cst_8 : f32 to vector<8x1xf32>
    %14 = arith.divf %12, %13 : vector<8x1xf32>
    %15 = arith.mulf %8, %8 : vector<8x32xf32>
    %cst_9 = arith.constant dense<0.000000e+00> : vector<8xf32>
    %16 = vector.multi_reduction <add>, %15, %cst_9 [1] : vector<8x32xf32> to vector<8xf32>
    %17 = vector.shape_cast %16 : vector<8xf32> to vector<8x1xf32>
    %cst_10 = arith.constant 3.200000e+01 : f32
    %18 = vector.broadcast %cst_10 : f32 to vector<8x1xf32>
    %19 = arith.divf %17, %18 : vector<8x1xf32>
    %20 = arith.mulf %14, %14 : vector<8x1xf32>
    %21 = arith.subf %19, %20 : vector<8x1xf32>
    %22 = vector.broadcast %14 : vector<8x1xf32> to vector<8x32xf32>
    %23 = arith.subf %8, %22 : vector<8x32xf32>
    %cst_11 = arith.constant 9.99999974E-6 : f32
    %24 = vector.broadcast %cst_11 : f32 to vector<8x1xf32>
    %25 = arith.addf %21, %24 : vector<8x1xf32>
    %26 = math.rsqrt %25 : vector<8x1xf32>
    %27 = vector.broadcast %26 : vector<8x1xf32> to vector<8x32xf32>
    %28 = arith.mulf %23, %27 : vector<8x32xf32>
    %29 = vector.broadcast %9 : vector<1x32xf32> to vector<8x32xf32>
    %30 = arith.mulf %28, %29 : vector<8x32xf32>
    %31 = vector.broadcast %10 : vector<1x32xf32> to vector<8x32xf32>
    %32 = arith.addf %30, %31 : vector<8x32xf32>
    %cst_12 = arith.constant 0.000000e+00 : f32
    %33 = vector.broadcast %cst_12 : f32 to vector<8x32xf32>
    %34 = arith.cmpf oge, %32, %33 : vector<8x32xf32>
    %cst_13 = arith.constant 0.00999999977 : f32
    %35 = vector.broadcast %cst_13 : f32 to vector<8x32xf32>
    %36 = arith.mulf %35, %32 : vector<8x32xf32>
    %37 = arith.select %34, %32, %36 : vector<8x32xi1>, vector<8x32xf32>
    %38 = arith.truncf %37 : vector<8x32xf32> to vector<8x32xbf16>
    %c1 = arith.constant 1 : index
    %c0_14 = arith.constant 0 : index
    %c0_15 = arith.constant 0 : index
    %39 = vector.load %arg4[%c1, %c0_14, %c0_15] : memref<8x3x64xf32, #tpu.memory_space<vmem>>, vector<1x3x64xf32>
    %40 = vector.shape_cast %39 : vector<1x3x64xf32> to vector<3x64xf32>
    %c1_16 = arith.constant 1 : index
    %c0_17 = arith.constant 0 : index
    %c0_18 = arith.constant 0 : index
    %41 = vector.load %arg2[%c1_16, %c0_17, %c0_18] : memref<4x32x32xbf16, #tpu.memory_space<vmem>>, vector<1x32x32xbf16>
    %42 = vector.shape_cast %41 : vector<1x32x32xbf16> to vector<32x32xbf16>
    %cst_19 = arith.constant dense<0.000000e+00> : vector<8x32xf32>
    %43 = tpu.matmul %38, %42, %cst_19 {dimension_numbers = #tpu.dot_dimension_numbers<[1], [0], [0], [1], [0, 0, 1, 1], [], []>} : vector<8x32xbf16>, vector<32x32xbf16>, vector<8x32xf32> -> vector<8x32xf32>
    %44 = vector.extract_strided_slice %40 {offsets = [0, 0], sizes = [1, 32], strides = [1, 1]} : vector<3x64xf32> to vector<1x32xf32>
    %45 = vector.broadcast %44 : vector<1x32xf32> to vector<8x32xf32>
    %46 = arith.addf %43, %45 : vector<8x32xf32>
    %47 = vector.extract_strided_slice %40 {offsets = [1, 0], sizes = [1, 32], strides = [1, 1]} : vector<3x64xf32> to vector<1x32xf32>
    %48 = vector.extract_strided_slice %40 {offsets = [2, 0], sizes = [1, 32], strides = [1, 1]} : vector<3x64xf32> to vector<1x32xf32>
    %cst_20 = arith.constant dense<0.000000e+00> : vector<8xf32>
    %49 = vector.multi_reduction <add>, %46, %cst_20 [1] : vector<8x32xf32> to vector<8xf32>
    %50 = vector.shape_cast %49 : vector<8xf32> to vector<8x1xf32>
    %cst_21 = arith.constant 3.200000e+01 : f32
    %51 = vector.broadcast %cst_21 : f32 to vector<8x1xf32>
    %52 = arith.divf %50, %51 : vector<8x1xf32>
    %53 = arith.mulf %46, %46 : vector<8x32xf32>
    %cst_22 = arith.constant dense<0.000000e+00> : vector<8xf32>
    %54 = vector.multi_reduction <add>, %53, %cst_22 [1] : vector<8x32xf32> to vector<8xf32>
    %55 = vector.shape_cast %54 : vector<8xf32> to vector<8x1xf32>
    %cst_23 = arith.constant 3.200000e+01 : f32
    %56 = vector.broadcast %cst_23 : f32 to vector<8x1xf32>
    %57 = arith.divf %55, %56 : vector<8x1xf32>
    %58 = arith.mulf %52, %52 : vector<8x1xf32>
    %59 = arith.subf %57, %58 : vector<8x1xf32>
    %60 = vector.broadcast %52 : vector<8x1xf32> to vector<8x32xf32>
    %61 = arith.subf %46, %60 : vector<8x32xf32>
    %cst_24 = arith.constant 9.99999974E-6 : f32
    %62 = vector.broadcast %cst_24 : f32 to vector<8x1xf32>
    %63 = arith.addf %59, %62 : vector<8x1xf32>
    %64 = math.rsqrt %63 : vector<8x1xf32>
    %65 = vector.broadcast %64 : vector<8x1xf32> to vector<8x32xf32>
    %66 = arith.mulf %61, %65 : vector<8x32xf32>
    %67 = vector.broadcast %47 : vector<1x32xf32> to vector<8x32xf32>
    %68 = arith.mulf %66, %67 : vector<8x32xf32>
    %69 = vector.broadcast %48 : vector<1x32xf32> to vector<8x32xf32>
    %70 = arith.addf %68, %69 : vector<8x32xf32>
    %cst_25 = arith.constant 0.000000e+00 : f32
    %71 = vector.broadcast %cst_25 : f32 to vector<8x32xf32>
    %72 = arith.cmpf oge, %70, %71 : vector<8x32xf32>
    %cst_26 = arith.constant 0.00999999977 : f32
    %73 = vector.broadcast %cst_26 : f32 to vector<8x32xf32>
    %74 = arith.mulf %73, %70 : vector<8x32xf32>
    %75 = arith.select %72, %70, %74 : vector<8x32xi1>, vector<8x32xf32>
    %76 = arith.truncf %75 : vector<8x32xf32> to vector<8x32xbf16>
    %c2 = arith.constant 2 : index
    %c0_27 = arith.constant 0 : index
    %c0_28 = arith.constant 0 : index
    %77 = vector.load %arg4[%c2, %c0_27, %c0_28] : memref<8x3x64xf32, #tpu.memory_space<vmem>>, vector<1x3x64xf32>
    %78 = vector.shape_cast %77 : vector<1x3x64xf32> to vector<3x64xf32>
    %c2_29 = arith.constant 2 : index
    %c0_30 = arith.constant 0 : index
    %c0_31 = arith.constant 0 : index
    %79 = vector.load %arg2[%c2_29, %c0_30, %c0_31] : memref<4x32x32xbf16, #tpu.memory_space<vmem>>, vector<1x32x32xbf16>
    %80 = vector.shape_cast %79 : vector<1x32x32xbf16> to vector<32x32xbf16>
    %cst_32 = arith.constant dense<0.000000e+00> : vector<8x32xf32>
    %81 = tpu.matmul %76, %80, %cst_32 {dimension_numbers = #tpu.dot_dimension_numbers<[1], [0], [0], [1], [0, 0, 1, 1], [], []>} : vector<8x32xbf16>, vector<32x32xbf16>, vector<8x32xf32> -> vector<8x32xf32>
    %82 = vector.extract_strided_slice %78 {offsets = [0, 0], sizes = [1, 32], strides = [1, 1]} : vector<3x64xf32> to vector<1x32xf32>
    %83 = vector.broadcast %82 : vector<1x32xf32> to vector<8x32xf32>
    %84 = arith.addf %81, %83 : vector<8x32xf32>
    %85 = vector.extract_strided_slice %78 {offsets = [1, 0], sizes = [1, 32], strides = [1, 1]} : vector<3x64xf32> to vector<1x32xf32>
    %86 = vector.extract_strided_slice %78 {offsets = [2, 0], sizes = [1, 32], strides = [1, 1]} : vector<3x64xf32> to vector<1x32xf32>
    %cst_33 = arith.constant dense<0.000000e+00> : vector<8xf32>
    %87 = vector.multi_reduction <add>, %84, %cst_33 [1] : vector<8x32xf32> to vector<8xf32>
    %88 = vector.shape_cast %87 : vector<8xf32> to vector<8x1xf32>
    %cst_34 = arith.constant 3.200000e+01 : f32
    %89 = vector.broadcast %cst_34 : f32 to vector<8x1xf32>
    %90 = arith.divf %88, %89 : vector<8x1xf32>
    %91 = arith.mulf %84, %84 : vector<8x32xf32>
    %cst_35 = arith.constant dense<0.000000e+00> : vector<8xf32>
    %92 = vector.multi_reduction <add>, %91, %cst_35 [1] : vector<8x32xf32> to vector<8xf32>
    %93 = vector.shape_cast %92 : vector<8xf32> to vector<8x1xf32>
    %cst_36 = arith.constant 3.200000e+01 : f32
    %94 = vector.broadcast %cst_36 : f32 to vector<8x1xf32>
    %95 = arith.divf %93, %94 : vector<8x1xf32>
    %96 = arith.mulf %90, %90 : vector<8x1xf32>
    %97 = arith.subf %95, %96 : vector<8x1xf32>
    %98 = vector.broadcast %90 : vector<8x1xf32> to vector<8x32xf32>
    %99 = arith.subf %84, %98 : vector<8x32xf32>
    %cst_37 = arith.constant 9.99999974E-6 : f32
    %100 = vector.broadcast %cst_37 : f32 to vector<8x1xf32>
    %101 = arith.addf %97, %100 : vector<8x1xf32>
    %102 = math.rsqrt %101 : vector<8x1xf32>
    %103 = vector.broadcast %102 : vector<8x1xf32> to vector<8x32xf32>
    %104 = arith.mulf %99, %103 : vector<8x32xf32>
    %105 = vector.broadcast %85 : vector<1x32xf32> to vector<8x32xf32>
    %106 = arith.mulf %104, %105 : vector<8x32xf32>
    %107 = vector.broadcast %86 : vector<1x32xf32> to vector<8x32xf32>
    %108 = arith.addf %106, %107 : vector<8x32xf32>
    %cst_38 = arith.constant 0.000000e+00 : f32
    %109 = vector.broadcast %cst_38 : f32 to vector<8x32xf32>
    %110 = arith.cmpf oge, %108, %109 : vector<8x32xf32>
    %cst_39 = arith.constant 0.00999999977 : f32
    %111 = vector.broadcast %cst_39 : f32 to vector<8x32xf32>
    %112 = arith.mulf %111, %108 : vector<8x32xf32>
    %113 = arith.select %110, %108, %112 : vector<8x32xi1>, vector<8x32xf32>
    %114 = arith.truncf %113 : vector<8x32xf32> to vector<8x32xbf16>
    %c3 = arith.constant 3 : index
    %c0_40 = arith.constant 0 : index
    %c0_41 = arith.constant 0 : index
    %115 = vector.load %arg4[%c3, %c0_40, %c0_41] : memref<8x3x64xf32, #tpu.memory_space<vmem>>, vector<1x3x64xf32>
    %116 = vector.shape_cast %115 : vector<1x3x64xf32> to vector<3x64xf32>
    %c3_42 = arith.constant 3 : index
    %c0_43 = arith.constant 0 : index
    %c0_44 = arith.constant 0 : index
    %117 = vector.load %arg2[%c3_42, %c0_43, %c0_44] : memref<4x32x32xbf16, #tpu.memory_space<vmem>>, vector<1x32x32xbf16>
    %118 = vector.shape_cast %117 : vector<1x32x32xbf16> to vector<32x32xbf16>
    %cst_45 = arith.constant dense<0.000000e+00> : vector<8x32xf32>
    %119 = tpu.matmul %114, %118, %cst_45 {dimension_numbers = #tpu.dot_dimension_numbers<[1], [0], [0], [1], [0, 0, 1, 1], [], []>} : vector<8x32xbf16>, vector<32x32xbf16>, vector<8x32xf32> -> vector<8x32xf32>
    %120 = vector.extract_strided_slice %116 {offsets = [0, 0], sizes = [1, 32], strides = [1, 1]} : vector<3x64xf32> to vector<1x32xf32>
    %121 = vector.broadcast %120 : vector<1x32xf32> to vector<8x32xf32>
    %122 = arith.addf %119, %121 : vector<8x32xf32>
    %123 = vector.extract_strided_slice %116 {offsets = [1, 0], sizes = [1, 32], strides = [1, 1]} : vector<3x64xf32> to vector<1x32xf32>
    %124 = vector.extract_strided_slice %116 {offsets = [2, 0], sizes = [1, 32], strides = [1, 1]} : vector<3x64xf32> to vector<1x32xf32>
    %cst_46 = arith.constant dense<0.000000e+00> : vector<8xf32>
    %125 = vector.multi_reduction <add>, %122, %cst_46 [1] : vector<8x32xf32> to vector<8xf32>
    %126 = vector.shape_cast %125 : vector<8xf32> to vector<8x1xf32>
    %cst_47 = arith.constant 3.200000e+01 : f32
    %127 = vector.broadcast %cst_47 : f32 to vector<8x1xf32>
    %128 = arith.divf %126, %127 : vector<8x1xf32>
    %129 = arith.mulf %122, %122 : vector<8x32xf32>
    %cst_48 = arith.constant dense<0.000000e+00> : vector<8xf32>
    %130 = vector.multi_reduction <add>, %129, %cst_48 [1] : vector<8x32xf32> to vector<8xf32>
    %131 = vector.shape_cast %130 : vector<8xf32> to vector<8x1xf32>
    %cst_49 = arith.constant 3.200000e+01 : f32
    %132 = vector.broadcast %cst_49 : f32 to vector<8x1xf32>
    %133 = arith.divf %131, %132 : vector<8x1xf32>
    %134 = arith.mulf %128, %128 : vector<8x1xf32>
    %135 = arith.subf %133, %134 : vector<8x1xf32>
    %136 = vector.broadcast %128 : vector<8x1xf32> to vector<8x32xf32>
    %137 = arith.subf %122, %136 : vector<8x32xf32>
    %cst_50 = arith.constant 9.99999974E-6 : f32
    %138 = vector.broadcast %cst_50 : f32 to vector<8x1xf32>
    %139 = arith.addf %135, %138 : vector<8x1xf32>
    %140 = math.rsqrt %139 : vector<8x1xf32>
    %141 = vector.broadcast %140 : vector<8x1xf32> to vector<8x32xf32>
    %142 = arith.mulf %137, %141 : vector<8x32xf32>
    %143 = vector.broadcast %123 : vector<1x32xf32> to vector<8x32xf32>
    %144 = arith.mulf %142, %143 : vector<8x32xf32>
    %145 = vector.broadcast %124 : vector<1x32xf32> to vector<8x32xf32>
    %146 = arith.addf %144, %145 : vector<8x32xf32>
    %cst_51 = arith.constant 0.000000e+00 : f32
    %147 = vector.broadcast %cst_51 : f32 to vector<8x32xf32>
    %148 = arith.cmpf oge, %146, %147 : vector<8x32xf32>
    %cst_52 = arith.constant 0.00999999977 : f32
    %149 = vector.broadcast %cst_52 : f32 to vector<8x32xf32>
    %150 = arith.mulf %149, %146 : vector<8x32xf32>
    %151 = arith.select %148, %146, %150 : vector<8x32xi1>, vector<8x32xf32>
    %152 = arith.truncf %151 : vector<8x32xf32> to vector<8x32xbf16>
    %cst_53 = arith.constant 0.000000e+00 : bf16
    %153 = vector.broadcast %cst_53 : bf16 to vector<8x32xbf16>
    %154 = tpu.concatenate %152, %153 in 1 : vector<8x32xbf16>, vector<8x32xbf16> -> vector<8x64xbf16>
    %c4 = arith.constant 4 : index
    %c0_54 = arith.constant 0 : index
    %c0_55 = arith.constant 0 : index
    %155 = vector.load %arg4[%c4, %c0_54, %c0_55] : memref<8x3x64xf32, #tpu.memory_space<vmem>>, vector<1x3x64xf32>
    %156 = vector.shape_cast %155 : vector<1x3x64xf32> to vector<3x64xf32>
    %c0_56 = arith.constant 0 : index
    %c0_57 = arith.constant 0 : index
    %c0_58 = arith.constant 0 : index
    %157 = vector.load %arg3[%c0_56, %c0_57, %c0_58] : memref<4x64x64xbf16, #tpu.memory_space<vmem>>, vector<1x64x64xbf16>
    %158 = vector.shape_cast %157 : vector<1x64x64xbf16> to vector<64x64xbf16>
    %cst_59 = arith.constant dense<0.000000e+00> : vector<8x64xf32>
    %159 = tpu.matmul %154, %158, %cst_59 {dimension_numbers = #tpu.dot_dimension_numbers<[1], [0], [0], [1], [0, 0, 1, 1], [], []>} : vector<8x64xbf16>, vector<64x64xbf16>, vector<8x64xf32> -> vector<8x64xf32>
    %160 = vector.extract_strided_slice %156 {offsets = [0, 0], sizes = [1, 64], strides = [1, 1]} : vector<3x64xf32> to vector<1x64xf32>
    %161 = vector.broadcast %160 : vector<1x64xf32> to vector<8x64xf32>
    %162 = arith.addf %159, %161 : vector<8x64xf32>
    %163 = vector.extract_strided_slice %162 {offsets = [0, 0], sizes = [8, 32], strides = [1, 1]} : vector<8x64xf32> to vector<8x32xf32>
    %164 = vector.extract_strided_slice %156 {offsets = [1, 0], sizes = [1, 32], strides = [1, 1]} : vector<3x64xf32> to vector<1x32xf32>
    %165 = vector.extract_strided_slice %156 {offsets = [2, 0], sizes = [1, 32], strides = [1, 1]} : vector<3x64xf32> to vector<1x32xf32>
    %cst_60 = arith.constant dense<0.000000e+00> : vector<8xf32>
    %166 = vector.multi_reduction <add>, %163, %cst_60 [1] : vector<8x32xf32> to vector<8xf32>
    %167 = vector.shape_cast %166 : vector<8xf32> to vector<8x1xf32>
    %cst_61 = arith.constant 3.200000e+01 : f32
    %168 = vector.broadcast %cst_61 : f32 to vector<8x1xf32>
    %169 = arith.divf %167, %168 : vector<8x1xf32>
    %170 = arith.mulf %163, %163 : vector<8x32xf32>
    %cst_62 = arith.constant dense<0.000000e+00> : vector<8xf32>
    %171 = vector.multi_reduction <add>, %170, %cst_62 [1] : vector<8x32xf32> to vector<8xf32>
    %172 = vector.shape_cast %171 : vector<8xf32> to vector<8x1xf32>
    %cst_63 = arith.constant 3.200000e+01 : f32
    %173 = vector.broadcast %cst_63 : f32 to vector<8x1xf32>
    %174 = arith.divf %172, %173 : vector<8x1xf32>
    %175 = arith.mulf %169, %169 : vector<8x1xf32>
    %176 = arith.subf %174, %175 : vector<8x1xf32>
    %177 = vector.broadcast %169 : vector<8x1xf32> to vector<8x32xf32>
    %178 = arith.subf %163, %177 : vector<8x32xf32>
    %cst_64 = arith.constant 9.99999974E-6 : f32
    %179 = vector.broadcast %cst_64 : f32 to vector<8x1xf32>
    %180 = arith.addf %176, %179 : vector<8x1xf32>
    %181 = math.rsqrt %180 : vector<8x1xf32>
    %182 = vector.broadcast %181 : vector<8x1xf32> to vector<8x32xf32>
    %183 = arith.mulf %178, %182 : vector<8x32xf32>
    %184 = vector.broadcast %164 : vector<1x32xf32> to vector<8x32xf32>
    %185 = arith.mulf %183, %184 : vector<8x32xf32>
    %186 = vector.broadcast %165 : vector<1x32xf32> to vector<8x32xf32>
    %187 = arith.addf %185, %186 : vector<8x32xf32>
    %cst_65 = arith.constant 0.000000e+00 : f32
    %188 = vector.broadcast %cst_65 : f32 to vector<8x32xf32>
    %189 = arith.cmpf oge, %187, %188 : vector<8x32xf32>
    %cst_66 = arith.constant 0.00999999977 : f32
    %190 = vector.broadcast %cst_66 : f32 to vector<8x32xf32>
    %191 = arith.mulf %190, %187 : vector<8x32xf32>
    %192 = arith.select %189, %187, %191 : vector<8x32xi1>, vector<8x32xf32>
    %193 = vector.extract_strided_slice %162 {offsets = [0, 32], sizes = [8, 32], strides = [1, 1]} : vector<8x64xf32> to vector<8x32xf32>
    %194 = vector.extract_strided_slice %156 {offsets = [1, 32], sizes = [1, 32], strides = [1, 1]} : vector<3x64xf32> to vector<1x32xf32>
    %195 = vector.extract_strided_slice %156 {offsets = [2, 32], sizes = [1, 32], strides = [1, 1]} : vector<3x64xf32> to vector<1x32xf32>
    %cst_67 = arith.constant dense<0.000000e+00> : vector<8xf32>
    %196 = vector.multi_reduction <add>, %193, %cst_67 [1] : vector<8x32xf32> to vector<8xf32>
    %197 = vector.shape_cast %196 : vector<8xf32> to vector<8x1xf32>
    %cst_68 = arith.constant 3.200000e+01 : f32
    %198 = vector.broadcast %cst_68 : f32 to vector<8x1xf32>
    %199 = arith.divf %197, %198 : vector<8x1xf32>
    %200 = arith.mulf %193, %193 : vector<8x32xf32>
    %cst_69 = arith.constant dense<0.000000e+00> : vector<8xf32>
    %201 = vector.multi_reduction <add>, %200, %cst_69 [1] : vector<8x32xf32> to vector<8xf32>
    %202 = vector.shape_cast %201 : vector<8xf32> to vector<8x1xf32>
    %cst_70 = arith.constant 3.200000e+01 : f32
    %203 = vector.broadcast %cst_70 : f32 to vector<8x1xf32>
    %204 = arith.divf %202, %203 : vector<8x1xf32>
    %205 = arith.mulf %199, %199 : vector<8x1xf32>
    %206 = arith.subf %204, %205 : vector<8x1xf32>
    %207 = vector.broadcast %199 : vector<8x1xf32> to vector<8x32xf32>
    %208 = arith.subf %193, %207 : vector<8x32xf32>
    %cst_71 = arith.constant 9.99999974E-6 : f32
    %209 = vector.broadcast %cst_71 : f32 to vector<8x1xf32>
    %210 = arith.addf %206, %209 : vector<8x1xf32>
    %211 = math.rsqrt %210 : vector<8x1xf32>
    %212 = vector.broadcast %211 : vector<8x1xf32> to vector<8x32xf32>
    %213 = arith.mulf %208, %212 : vector<8x32xf32>
    %214 = vector.broadcast %194 : vector<1x32xf32> to vector<8x32xf32>
    %215 = arith.mulf %213, %214 : vector<8x32xf32>
    %216 = vector.broadcast %195 : vector<1x32xf32> to vector<8x32xf32>
    %217 = arith.addf %215, %216 : vector<8x32xf32>
    %cst_72 = arith.constant 0.000000e+00 : f32
    %218 = vector.broadcast %cst_72 : f32 to vector<8x32xf32>
    %219 = arith.cmpf oge, %217, %218 : vector<8x32xf32>
    %cst_73 = arith.constant 0.00999999977 : f32
    %220 = vector.broadcast %cst_73 : f32 to vector<8x32xf32>
    %221 = arith.mulf %220, %217 : vector<8x32xf32>
    %222 = arith.select %219, %217, %221 : vector<8x32xi1>, vector<8x32xf32>
    %223 = tpu.concatenate %192, %222 in 1 : vector<8x32xf32>, vector<8x32xf32> -> vector<8x64xf32>
    %224 = arith.truncf %223 : vector<8x64xf32> to vector<8x64xbf16>
    %c5 = arith.constant 5 : index
    %c0_74 = arith.constant 0 : index
    %c0_75 = arith.constant 0 : index
    %225 = vector.load %arg4[%c5, %c0_74, %c0_75] : memref<8x3x64xf32, #tpu.memory_space<vmem>>, vector<1x3x64xf32>
    %226 = vector.shape_cast %225 : vector<1x3x64xf32> to vector<3x64xf32>
    %c1_76 = arith.constant 1 : index
    %c0_77 = arith.constant 0 : index
    %c0_78 = arith.constant 0 : index
    %227 = vector.load %arg3[%c1_76, %c0_77, %c0_78] : memref<4x64x64xbf16, #tpu.memory_space<vmem>>, vector<1x64x64xbf16>
    %228 = vector.shape_cast %227 : vector<1x64x64xbf16> to vector<64x64xbf16>
    %cst_79 = arith.constant dense<0.000000e+00> : vector<8x64xf32>
    %229 = tpu.matmul %224, %228, %cst_79 {dimension_numbers = #tpu.dot_dimension_numbers<[1], [0], [0], [1], [0, 0, 1, 1], [], []>} : vector<8x64xbf16>, vector<64x64xbf16>, vector<8x64xf32> -> vector<8x64xf32>
    %230 = vector.extract_strided_slice %226 {offsets = [0, 0], sizes = [1, 64], strides = [1, 1]} : vector<3x64xf32> to vector<1x64xf32>
    %231 = vector.broadcast %230 : vector<1x64xf32> to vector<8x64xf32>
    %232 = arith.addf %229, %231 : vector<8x64xf32>
    %233 = vector.extract_strided_slice %232 {offsets = [0, 0], sizes = [8, 32], strides = [1, 1]} : vector<8x64xf32> to vector<8x32xf32>
    %234 = vector.extract_strided_slice %226 {offsets = [1, 0], sizes = [1, 32], strides = [1, 1]} : vector<3x64xf32> to vector<1x32xf32>
    %235 = vector.extract_strided_slice %226 {offsets = [2, 0], sizes = [1, 32], strides = [1, 1]} : vector<3x64xf32> to vector<1x32xf32>
    %cst_80 = arith.constant dense<0.000000e+00> : vector<8xf32>
    %236 = vector.multi_reduction <add>, %233, %cst_80 [1] : vector<8x32xf32> to vector<8xf32>
    %237 = vector.shape_cast %236 : vector<8xf32> to vector<8x1xf32>
    %cst_81 = arith.constant 3.200000e+01 : f32
    %238 = vector.broadcast %cst_81 : f32 to vector<8x1xf32>
    %239 = arith.divf %237, %238 : vector<8x1xf32>
    %240 = arith.mulf %233, %233 : vector<8x32xf32>
    %cst_82 = arith.constant dense<0.000000e+00> : vector<8xf32>
    %241 = vector.multi_reduction <add>, %240, %cst_82 [1] : vector<8x32xf32> to vector<8xf32>
    %242 = vector.shape_cast %241 : vector<8xf32> to vector<8x1xf32>
    %cst_83 = arith.constant 3.200000e+01 : f32
    %243 = vector.broadcast %cst_83 : f32 to vector<8x1xf32>
    %244 = arith.divf %242, %243 : vector<8x1xf32>
    %245 = arith.mulf %239, %239 : vector<8x1xf32>
    %246 = arith.subf %244, %245 : vector<8x1xf32>
    %247 = vector.broadcast %239 : vector<8x1xf32> to vector<8x32xf32>
    %248 = arith.subf %233, %247 : vector<8x32xf32>
    %cst_84 = arith.constant 9.99999974E-6 : f32
    %249 = vector.broadcast %cst_84 : f32 to vector<8x1xf32>
    %250 = arith.addf %246, %249 : vector<8x1xf32>
    %251 = math.rsqrt %250 : vector<8x1xf32>
    %252 = vector.broadcast %251 : vector<8x1xf32> to vector<8x32xf32>
    %253 = arith.mulf %248, %252 : vector<8x32xf32>
    %254 = vector.broadcast %234 : vector<1x32xf32> to vector<8x32xf32>
    %255 = arith.mulf %253, %254 : vector<8x32xf32>
    %256 = vector.broadcast %235 : vector<1x32xf32> to vector<8x32xf32>
    %257 = arith.addf %255, %256 : vector<8x32xf32>
    %cst_85 = arith.constant 0.000000e+00 : f32
    %258 = vector.broadcast %cst_85 : f32 to vector<8x32xf32>
    %259 = arith.cmpf oge, %257, %258 : vector<8x32xf32>
    %cst_86 = arith.constant 0.00999999977 : f32
    %260 = vector.broadcast %cst_86 : f32 to vector<8x32xf32>
    %261 = arith.mulf %260, %257 : vector<8x32xf32>
    %262 = arith.select %259, %257, %261 : vector<8x32xi1>, vector<8x32xf32>
    %263 = vector.extract_strided_slice %232 {offsets = [0, 32], sizes = [8, 32], strides = [1, 1]} : vector<8x64xf32> to vector<8x32xf32>
    %264 = vector.extract_strided_slice %226 {offsets = [1, 32], sizes = [1, 32], strides = [1, 1]} : vector<3x64xf32> to vector<1x32xf32>
    %265 = vector.extract_strided_slice %226 {offsets = [2, 32], sizes = [1, 32], strides = [1, 1]} : vector<3x64xf32> to vector<1x32xf32>
    %cst_87 = arith.constant dense<0.000000e+00> : vector<8xf32>
    %266 = vector.multi_reduction <add>, %263, %cst_87 [1] : vector<8x32xf32> to vector<8xf32>
    %267 = vector.shape_cast %266 : vector<8xf32> to vector<8x1xf32>
    %cst_88 = arith.constant 3.200000e+01 : f32
    %268 = vector.broadcast %cst_88 : f32 to vector<8x1xf32>
    %269 = arith.divf %267, %268 : vector<8x1xf32>
    %270 = arith.mulf %263, %263 : vector<8x32xf32>
    %cst_89 = arith.constant dense<0.000000e+00> : vector<8xf32>
    %271 = vector.multi_reduction <add>, %270, %cst_89 [1] : vector<8x32xf32> to vector<8xf32>
    %272 = vector.shape_cast %271 : vector<8xf32> to vector<8x1xf32>
    %cst_90 = arith.constant 3.200000e+01 : f32
    %273 = vector.broadcast %cst_90 : f32 to vector<8x1xf32>
    %274 = arith.divf %272, %273 : vector<8x1xf32>
    %275 = arith.mulf %269, %269 : vector<8x1xf32>
    %276 = arith.subf %274, %275 : vector<8x1xf32>
    %277 = vector.broadcast %269 : vector<8x1xf32> to vector<8x32xf32>
    %278 = arith.subf %263, %277 : vector<8x32xf32>
    %cst_91 = arith.constant 9.99999974E-6 : f32
    %279 = vector.broadcast %cst_91 : f32 to vector<8x1xf32>
    %280 = arith.addf %276, %279 : vector<8x1xf32>
    %281 = math.rsqrt %280 : vector<8x1xf32>
    %282 = vector.broadcast %281 : vector<8x1xf32> to vector<8x32xf32>
    %283 = arith.mulf %278, %282 : vector<8x32xf32>
    %284 = vector.broadcast %264 : vector<1x32xf32> to vector<8x32xf32>
    %285 = arith.mulf %283, %284 : vector<8x32xf32>
    %286 = vector.broadcast %265 : vector<1x32xf32> to vector<8x32xf32>
    %287 = arith.addf %285, %286 : vector<8x32xf32>
    %cst_92 = arith.constant 0.000000e+00 : f32
    %288 = vector.broadcast %cst_92 : f32 to vector<8x32xf32>
    %289 = arith.cmpf oge, %287, %288 : vector<8x32xf32>
    %cst_93 = arith.constant 0.00999999977 : f32
    %290 = vector.broadcast %cst_93 : f32 to vector<8x32xf32>
    %291 = arith.mulf %290, %287 : vector<8x32xf32>
    %292 = arith.select %289, %287, %291 : vector<8x32xi1>, vector<8x32xf32>
    %293 = tpu.concatenate %262, %292 in 1 : vector<8x32xf32>, vector<8x32xf32> -> vector<8x64xf32>
    %294 = arith.truncf %293 : vector<8x64xf32> to vector<8x64xbf16>
    %c6 = arith.constant 6 : index
    %c0_94 = arith.constant 0 : index
    %c0_95 = arith.constant 0 : index
    %295 = vector.load %arg4[%c6, %c0_94, %c0_95] : memref<8x3x64xf32, #tpu.memory_space<vmem>>, vector<1x3x64xf32>
    %296 = vector.shape_cast %295 : vector<1x3x64xf32> to vector<3x64xf32>
    %c2_96 = arith.constant 2 : index
    %c0_97 = arith.constant 0 : index
    %c0_98 = arith.constant 0 : index
    %297 = vector.load %arg3[%c2_96, %c0_97, %c0_98] : memref<4x64x64xbf16, #tpu.memory_space<vmem>>, vector<1x64x64xbf16>
    %298 = vector.shape_cast %297 : vector<1x64x64xbf16> to vector<64x64xbf16>
    %cst_99 = arith.constant dense<0.000000e+00> : vector<8x64xf32>
    %299 = tpu.matmul %294, %298, %cst_99 {dimension_numbers = #tpu.dot_dimension_numbers<[1], [0], [0], [1], [0, 0, 1, 1], [], []>} : vector<8x64xbf16>, vector<64x64xbf16>, vector<8x64xf32> -> vector<8x64xf32>
    %300 = vector.extract_strided_slice %296 {offsets = [0, 0], sizes = [1, 64], strides = [1, 1]} : vector<3x64xf32> to vector<1x64xf32>
    %301 = vector.broadcast %300 : vector<1x64xf32> to vector<8x64xf32>
    %302 = arith.addf %299, %301 : vector<8x64xf32>
    %303 = vector.extract_strided_slice %302 {offsets = [0, 0], sizes = [8, 32], strides = [1, 1]} : vector<8x64xf32> to vector<8x32xf32>
    %304 = vector.extract_strided_slice %296 {offsets = [1, 0], sizes = [1, 32], strides = [1, 1]} : vector<3x64xf32> to vector<1x32xf32>
    %305 = vector.extract_strided_slice %296 {offsets = [2, 0], sizes = [1, 32], strides = [1, 1]} : vector<3x64xf32> to vector<1x32xf32>
    %cst_100 = arith.constant dense<0.000000e+00> : vector<8xf32>
    %306 = vector.multi_reduction <add>, %303, %cst_100 [1] : vector<8x32xf32> to vector<8xf32>
    %307 = vector.shape_cast %306 : vector<8xf32> to vector<8x1xf32>
    %cst_101 = arith.constant 3.200000e+01 : f32
    %308 = vector.broadcast %cst_101 : f32 to vector<8x1xf32>
    %309 = arith.divf %307, %308 : vector<8x1xf32>
    %310 = arith.mulf %303, %303 : vector<8x32xf32>
    %cst_102 = arith.constant dense<0.000000e+00> : vector<8xf32>
    %311 = vector.multi_reduction <add>, %310, %cst_102 [1] : vector<8x32xf32> to vector<8xf32>
    %312 = vector.shape_cast %311 : vector<8xf32> to vector<8x1xf32>
    %cst_103 = arith.constant 3.200000e+01 : f32
    %313 = vector.broadcast %cst_103 : f32 to vector<8x1xf32>
    %314 = arith.divf %312, %313 : vector<8x1xf32>
    %315 = arith.mulf %309, %309 : vector<8x1xf32>
    %316 = arith.subf %314, %315 : vector<8x1xf32>
    %317 = vector.broadcast %309 : vector<8x1xf32> to vector<8x32xf32>
    %318 = arith.subf %303, %317 : vector<8x32xf32>
    %cst_104 = arith.constant 9.99999974E-6 : f32
    %319 = vector.broadcast %cst_104 : f32 to vector<8x1xf32>
    %320 = arith.addf %316, %319 : vector<8x1xf32>
    %321 = math.rsqrt %320 : vector<8x1xf32>
    %322 = vector.broadcast %321 : vector<8x1xf32> to vector<8x32xf32>
    %323 = arith.mulf %318, %322 : vector<8x32xf32>
    %324 = vector.broadcast %304 : vector<1x32xf32> to vector<8x32xf32>
    %325 = arith.mulf %323, %324 : vector<8x32xf32>
    %326 = vector.broadcast %305 : vector<1x32xf32> to vector<8x32xf32>
    %327 = arith.addf %325, %326 : vector<8x32xf32>
    %cst_105 = arith.constant 0.000000e+00 : f32
    %328 = vector.broadcast %cst_105 : f32 to vector<8x32xf32>
    %329 = arith.cmpf oge, %327, %328 : vector<8x32xf32>
    %cst_106 = arith.constant 0.00999999977 : f32
    %330 = vector.broadcast %cst_106 : f32 to vector<8x32xf32>
    %331 = arith.mulf %330, %327 : vector<8x32xf32>
    %332 = arith.select %329, %327, %331 : vector<8x32xi1>, vector<8x32xf32>
    %333 = vector.extract_strided_slice %302 {offsets = [0, 32], sizes = [8, 32], strides = [1, 1]} : vector<8x64xf32> to vector<8x32xf32>
    %334 = vector.extract_strided_slice %296 {offsets = [1, 32], sizes = [1, 32], strides = [1, 1]} : vector<3x64xf32> to vector<1x32xf32>
    %335 = vector.extract_strided_slice %296 {offsets = [2, 32], sizes = [1, 32], strides = [1, 1]} : vector<3x64xf32> to vector<1x32xf32>
    %cst_107 = arith.constant dense<0.000000e+00> : vector<8xf32>
    %336 = vector.multi_reduction <add>, %333, %cst_107 [1] : vector<8x32xf32> to vector<8xf32>
    %337 = vector.shape_cast %336 : vector<8xf32> to vector<8x1xf32>
    %cst_108 = arith.constant 3.200000e+01 : f32
    %338 = vector.broadcast %cst_108 : f32 to vector<8x1xf32>
    %339 = arith.divf %337, %338 : vector<8x1xf32>
    %340 = arith.mulf %333, %333 : vector<8x32xf32>
    %cst_109 = arith.constant dense<0.000000e+00> : vector<8xf32>
    %341 = vector.multi_reduction <add>, %340, %cst_109 [1] : vector<8x32xf32> to vector<8xf32>
    %342 = vector.shape_cast %341 : vector<8xf32> to vector<8x1xf32>
    %cst_110 = arith.constant 3.200000e+01 : f32
    %343 = vector.broadcast %cst_110 : f32 to vector<8x1xf32>
    %344 = arith.divf %342, %343 : vector<8x1xf32>
    %345 = arith.mulf %339, %339 : vector<8x1xf32>
    %346 = arith.subf %344, %345 : vector<8x1xf32>
    %347 = vector.broadcast %339 : vector<8x1xf32> to vector<8x32xf32>
    %348 = arith.subf %333, %347 : vector<8x32xf32>
    %cst_111 = arith.constant 9.99999974E-6 : f32
    %349 = vector.broadcast %cst_111 : f32 to vector<8x1xf32>
    %350 = arith.addf %346, %349 : vector<8x1xf32>
    %351 = math.rsqrt %350 : vector<8x1xf32>
    %352 = vector.broadcast %351 : vector<8x1xf32> to vector<8x32xf32>
    %353 = arith.mulf %348, %352 : vector<8x32xf32>
    %354 = vector.broadcast %334 : vector<1x32xf32> to vector<8x32xf32>
    %355 = arith.mulf %353, %354 : vector<8x32xf32>
    %356 = vector.broadcast %335 : vector<1x32xf32> to vector<8x32xf32>
    %357 = arith.addf %355, %356 : vector<8x32xf32>
    %cst_112 = arith.constant 0.000000e+00 : f32
    %358 = vector.broadcast %cst_112 : f32 to vector<8x32xf32>
    %359 = arith.cmpf oge, %357, %358 : vector<8x32xf32>
    %cst_113 = arith.constant 0.00999999977 : f32
    %360 = vector.broadcast %cst_113 : f32 to vector<8x32xf32>
    %361 = arith.mulf %360, %357 : vector<8x32xf32>
    %362 = arith.select %359, %357, %361 : vector<8x32xi1>, vector<8x32xf32>
    %363 = tpu.concatenate %332, %362 in 1 : vector<8x32xf32>, vector<8x32xf32> -> vector<8x64xf32>
    %364 = arith.truncf %363 : vector<8x64xf32> to vector<8x64xbf16>
    %c3_114 = arith.constant 3 : index
    %c0_115 = arith.constant 0 : index
    %c0_116 = arith.constant 0 : index
    %365 = vector.load %arg3[%c3_114, %c0_115, %c0_116] : memref<4x64x64xbf16, #tpu.memory_space<vmem>>, vector<1x64x64xbf16>
    %366 = vector.shape_cast %365 : vector<1x64x64xbf16> to vector<64x64xbf16>
    %cst_117 = arith.constant dense<0.000000e+00> : vector<8x64xf32>
    %367 = tpu.matmul %364, %366, %cst_117 {dimension_numbers = #tpu.dot_dimension_numbers<[1], [0], [0], [1], [0, 0, 1, 1], [], []>} : vector<8x64xbf16>, vector<64x64xbf16>, vector<8x64xf32> -> vector<8x64xf32>
    %c7 = arith.constant 7 : index
    %c0_118 = arith.constant 0 : index
    %c0_119 = arith.constant 0 : index
    %368 = vector.load %arg4[%c7, %c0_118, %c0_119] : memref<8x3x64xf32, #tpu.memory_space<vmem>>, vector<1x1x64xf32>
    %369 = vector.shape_cast %368 : vector<1x1x64xf32> to vector<1x64xf32>
    %370 = vector.broadcast %369 : vector<1x64xf32> to vector<8x64xf32>
    %371 = arith.addf %367, %370 : vector<8x64xf32>
    %c0_120 = arith.constant 0 : index
    %c0_121 = arith.constant 0 : index
    %372 = vector.load %arg5[%c0_120, %c0_121] : memref<8x64xf32, #tpu.memory_space<vmem>>, vector<8x64xf32>
    tpu.vector_store %arg5[%c0_120, %c0_121], %371 {strides = array<i32>} : memref<8x64xf32, #tpu.memory_space<vmem>>, vector<8x64xf32>,
    return
  }
  func.func @transform_0(%arg0: i32) -> (i32, i32) {
    %c0_i32 = arith.constant 0 : i32
    %c0_i32_0 = arith.constant 0 : i32
    return %arg0, %c0_i32 : i32, i32
  }
  func.func @transform_1(%arg0: i32) -> (i32, i32, i32) {
    %c0_i32 = arith.constant 0 : i32
    %c0_i32_0 = arith.constant 0 : i32
    %c0_i32_1 = arith.constant 0 : i32
    %c0_i32_2 = arith.constant 0 : i32
    return %c0_i32, %c0_i32_0, %c0_i32_1 : i32, i32, i32
  }
  func.func @transform_2(%arg0: i32) -> (i32, i32, i32) {
    %c0_i32 = arith.constant 0 : i32
    %c0_i32_0 = arith.constant 0 : i32
    %c0_i32_1 = arith.constant 0 : i32
    %c0_i32_2 = arith.constant 0 : i32
    return %c0_i32, %c0_i32_0, %c0_i32_1 : i32, i32, i32
  }
  func.func @transform_3(%arg0: i32) -> (i32, i32, i32) {
    %c0_i32 = arith.constant 0 : i32
    %c0_i32_0 = arith.constant 0 : i32
    %c0_i32_1 = arith.constant 0 : i32
    %c0_i32_2 = arith.constant 0 : i32
    return %c0_i32, %c0_i32_0, %c0_i32_1 : i32, i32, i32
  }
  func.func @transform_4(%arg0: i32) -> (i32, i32) {
    %c0_i32 = arith.constant 0 : i32
    %c0_i32_0 = arith.constant 0 : i32
    return %arg0, %c0_i32 : i32, i32
  }
}

</mosaic_0001>

<llo_original>
// kernel: actor_critic_forward.1
$region0: #{actor_critic_forward.1}
  #allocation0 [shape = 'u32[]', space=smem, size = 0x4, offset = 0x4, fixed_abs, tag = 'smem constant byte address 0x4 - core index']
  #allocation1 [shape = 'u32[144,128]{1,0:T(1,128)}', space=vmem, size = 0x12000, scoped, tag = 'internal scratch']
  %s0 = inlined_call_operand.vmem [shape: bf16[8,32], index: 0, kind: input, shape index: {}]
  %s1 = inlined_call_operand.vmem [shape: bf16[4,32,32], index: 1, kind: input, shape index: {}]
  %s2 = inlined_call_operand.hbm [shape: bf16[4,64,64], index: 2, kind: input, shape index: {}]
  %s3 = inlined_call_operand.vmem [shape: f32[8,3,64], index: 3, kind: input, shape index: {}]
  %s4 = inlined_call_operand.vmem [shape: f32[8,64], index: 4, kind: output, shape index: {}]
  %s5 = sld [smem:[#allocation0]]
  $region30: #{actor_critic_forward.1} parent=0
    _
  %s7 = ssub.s32 1, %s5
  %s8 = scalar_select 0, %s7, %s5
  $region1: #{actor_critic_forward.1} parent=0
    #allocation2 [shape = 'u8[65536]{0}', space=vmem, size = 0x10000, scoped, tag = 'input window, operand 2, single buffered']
    #allocation3 [shape = 's32[1]{0}', space=sflag, size = 0x4, scoped, tag = 'scoped memory for actor_critic_forward.1']
    %9 = vsyncpa [#allocation3], 0
    // Predicated region
    $region2: #{actor_critic_forward.1} parent=1 // pred_check
      _
    $region3: #{actor_critic_forward.1} parent=1 // pred_check_branch
      %11 = sbr.rel (0) target = $region5
    $region4: #{actor_critic_forward.1} parent=1 // pred_region
      _
    $region5: #{actor_critic_forward.1} parent=1 // pred_fallthru
      _
    // Predicated region
    $region6: #{actor_critic_forward.1} parent=1 // pred_check
      _
    $region7: #{actor_critic_forward.1} parent=1 // pred_check_branch
      %13 = sbr.rel (0) target = $region9
    $region8: #{actor_critic_forward.1} parent=1 // pred_region
      _
    $region9: #{actor_critic_forward.1} parent=1 // pred_fallthru
      _
    // Predicated region
    $region10: #{actor_critic_forward.1} parent=1 // pred_check
      _
    $region11: #{actor_critic_forward.1} parent=1 // pred_check_branch
      %15 = sbr.rel (0) target = $region13
    $region12: #{actor_critic_forward.1} parent=1 // pred_region
      %s17 = ssub.s32 2048, 2048
      %18 = vsyncadd [#allocation3], %s17
      %s19 = sshll.u32 [#allocation2], 4
      %s20 = int_to_ptr.vmem [resolvable:$true] %s19
      %25 = dma.hbm_to_vmem [thread:$0]  %s2, 2048, %s20, [#allocation3], 64, 64, 4
    $region13: #{actor_critic_forward.1} parent=1 // pred_fallthru
      _
    // Predicated region
    $region14: #{actor_critic_forward.1} parent=1 // pred_check
      _
    $region15: #{actor_critic_forward.1} parent=1 // pred_check_branch
      %27 = sbr.rel (0) target = $region17
    $region16: #{actor_critic_forward.1} parent=1 // pred_region
      _
    $region17: #{actor_critic_forward.1} parent=1 // pred_fallthru
      _
    // Predicated region
    $region18: #{actor_critic_forward.1} parent=1 // pred_check
      _
    $region19: #{actor_critic_forward.1} parent=1 // pred_check_branch
      %29 = sbr.rel (0) target = $region21
    $region20: #{actor_critic_forward.1} parent=1 // pred_region
      %30 = dma.done [#allocation3], 2048
    $region21: #{actor_critic_forward.1} parent=1 // pred_fallthru
      _
    %v32 = vld [vmem:[%s0] sm:$0xf]
    %v33 = vld [vmem:[%s3] sm:$0x7]
    %v34 = vld [vmem:[%s1] sm:$0xf]
    %v35 = vld [vmem:[%s1 + $0x4] sm:$0xf]
    %v36 = vld [vmem:[%s1 + $0x8] sm:$0xf]
    %v37 = vld [vmem:[%s1 + $0xc] sm:$0xf]
    %v38 = vlaneseq
    %v39 = vshrl.u32 %v38, 7
    %v40 = vsub.s32 0, %v39
    %v41 = vrot.slane %v33, %v40
    %v46 = vunpack.c.l.b16 %v34
    %v47 = vunpack.c.l.b16 %v35
    %v48 = vunpack.c.l.b16 %v36
    %v49 = vunpack.c.l.b16 %v37
    %v50 = vpack.c.b16 %v47, %v46
    %v51 = vpack.c.b16 %v49, %v48
    %vm54 = vcmask 261120
    %v56 = vsel %vm54, %v32, 0
    %58 = vmatprep.subr.bf16.mxu0 0
    %59 = vmatpush1.bf16.msra.mxu0 0
    %60 = vmatprep.subr.bf16.mxu0 0
    %61 = vmatpush1.bf16.msra.mxu0 0
    %62 = vmatprep.subr.bf16.mxu0 0
    %63 = vmatpush1.bf16.msra.mxu0 0
    %64 = vmatprep.subr.bf16.mxu0 0
    %65 = vmatpush1.bf16.msra.mxu0 0
    %66 = vmatprep.subr.bf16.mxu0 0
    %67 = vmatpush1.bf16.msra.mxu0 0
    %68 = vmatprep.subr.bf16.mxu0 0
    %69 = vmatpush1.bf16.msra.mxu0 0
    %70 = vmatprep.subr.bf16.mxu0 0
    %71 = vmatpush1.bf16.msra.mxu0 %v51
    %72 = vmatprep.subr.bf16.mxu0 0
    %73 = vmatpush1.bf16.msra.mxu0 %v50
    %74 = vmatprep.subr.bf16.mxu0 0
    %75 = vmatpush2.bf16.msra.mxu0 0
    %76 = vmatprep.subr.bf16.mxu0 0
    %77 = vmatpush2.bf16.msra.mxu0 0
    %78 = vmatprep.subr.bf16.mxu0 0
    %79 = vmatpush2.bf16.msra.mxu0 0
    %80 = vmatprep.subr.bf16.mxu0 0
    %81 = vmatpush2.bf16.msra.mxu0 0
    %82 = vmatprep.subr.bf16.mxu0 0
    %83 = vmatpush2.bf16.msra.mxu0 0
    %84 = vmatprep.subr.bf16.mxu0 0
    %85 = vmatpush2.bf16.msra.mxu0 0
    %86 = vmatprep.subr.bf16.mxu0 0
    %87 = vmatpush2.bf16.msra.mxu0 0
    %88 = vmatprep.subr.bf16.mxu0 0
    %89 = vmatpush2.bf16.msra.mxu0 0
    %90 = vmatprep.mubr.bf16.mxu0 0
    %91 = vmatmul.mubr.bf16.gmra.mxu0 %v56
    %v92 = vpop.f32.mrf.mxu0
    %v93 = vadd.f32 %v41, %v92
    %v94 = vpop.f32.mrf.mxu0
    %v95 = vpop.f32.mrf.mxu0
    %v96 = vpop.f32.mrf.mxu0
    %97 = vdwg.mxu0
    %v98 = vsel %vm54, %v93, 0.0
    %99 = vadd.xlane.f32.xlu0 %v98
    %v100 = vpop.xlane.xlu0 %99
    %v101 = vrcp.pop 32.0
    %v102 = vmul.f32 %v100, %v101
    %v103 = vmul.f32 %v93, %v93
    %v104 = vsel %vm54, %v103, 0.0
    %105 = vadd.xlane.f32.xlu0 %v104
    %v106 = vpop.xlane.xlu0 %105
    %v107 = vmul.f32 %v106, %v101
    %v108 = vmul.f32 %v102, %v102
    %v109 = vsub.f32 %v107, %v108
    %v110 = vsub.f32 %v93, %v102
    %v111 = vadd.f32 %v109, 1e-05
    %v112 = vrsqrt.pop %v111
    %v113 = vmul.f32 %v110, %v112
    %v114 = vlaneseq
    %v115 = vshrl.u32 %v114, 7
    %v116 = vsub.s32 1, %v115
    %v117 = vrot.slane %v33, %v116
    %v118 = vmul.f32 %v113, %v117
    %v119 = vlaneseq
    %v120 = vshrl.u32 %v119, 7
    %v121 = vsub.s32 2, %v120
    %v122 = vrot.slane %v33, %v121
    %v123 = vadd.f32 %v118, %v122
    %vm124 = vcmp.ge.f32.partialorder %v123, 0.0
    %v125 = vmul.f32 %v123, 0.01
    %v126 = vsel %vm124, %v123, %v125
    %v127 = vpack.c.bf16 %v126, %v126
    %s128 = scalar_lea.vmem %s3, 4
    %v129 = vld [vmem:[%s128] sm:$0x7]
    %s130 = scalar_lea.vmem %s1, 16
    %v131 = vld [vmem:[%s130] sm:$0xf]
    %v132 = vld [vmem:[%s130 + $0x4] sm:$0xf]
    %v133 = vld [vmem:[%s130 + $0x8] sm:$0xf]
    %v134 = vld [vmem:[%s130 + $0xc] sm:$0xf]
    %v135 = vlaneseq
    %v136 = vshrl.u32 %v135, 7
    %v137 = vsub.s32 0, %v136
    %v138 = vrot.slane %v129, %v137
    %v143 = vunpack.c.l.b16 %v131
    %v144 = vunpack.c.l.b16 %v132
    %v145 = vunpack.c.l.b16 %v133
    %v146 = vunpack.c.l.b16 %v134
    %v147 = vpack.c.b16 %v144, %v143
    %v148 = vpack.c.b16 %v146, %v145
    %v152 = vsel %vm54, %v127, 0
    %154 = vmatprep.subr.bf16.mxu0 0
    %155 = vmatpush1.bf16.msra.mxu0 0
    %156 = vmatprep.subr.bf16.mxu0 0
    %157 = vmatpush1.bf16.msra.mxu0 0
    %158 = vmatprep.subr.bf16.mxu0 0
    %159 = vmatpush1.bf16.msra.mxu0 0
    %160 = vmatprep.subr.bf16.mxu0 0
    %161 = vmatpush1.bf16.msra.mxu0 0
    %162 = vmatprep.subr.bf16.mxu0 0
    %163 = vmatpush1.bf16.msra.mxu0 0
    %164 = vmatprep.subr.bf16.mxu0 0
    %165 = vmatpush1.bf16.msra.mxu0 0
    %166 = vmatprep.subr.bf16.mxu0 0
    %167 = vmatpush1.bf16.msra.mxu0 %v148
    %168 = vmatprep.subr.bf16.mxu0 0
    %169 = vmatpush1.bf16.msra.mxu0 %v147
    %170 = vmatprep.subr.bf16.mxu0 0
    %171 = vmatpush2.bf16.msra.mxu0 0
    %172 = vmatprep.subr.bf16.mxu0 0
    %173 = vmatpush2.bf16.msra.mxu0 0
    %174 = vmatprep.subr.bf16.mxu0 0
    %175 = vmatpush2.bf16.msra.mxu0 0
    %176 = vmatprep.subr.bf16.mxu0 0
    %177 = vmatpush2.bf16.msra.mxu0 0
    %178 = vmatprep.subr.bf16.mxu0 0
    %179 = vmatpush2.bf16.msra.mxu0 0
    %180 = vmatprep.subr.bf16.mxu0 0
    %181 = vmatpush2.bf16.msra.mxu0 0
    %182 = vmatprep.subr.bf16.mxu0 0
    %183 = vmatpush2.bf16.msra.mxu0 0
    %184 = vmatprep.subr.bf16.mxu0 0
    %185 = vmatpush2.bf16.msra.mxu0 0
    %186 = vmatprep.mubr.bf16.mxu0 0
    %187 = vmatmul.mubr.bf16.gmra.mxu0 %v152
    %v188 = vpop.f32.mrf.mxu0
    %v189 = vadd.f32 %v138, %v188
    %v190 = vpop.f32.mrf.mxu0
    %v191 = vpop.f32.mrf.mxu0
    %v192 = vpop.f32.mrf.mxu0
    %193 = vdwg.mxu0
    %v194 = vsel %vm54, %v189, 0.0
    %195 = vadd.xlane.f32.xlu0 %v194
    %v196 = vpop.xlane.xlu0 %195
    %v197 = vmul.f32 %v196, %v101
    %v198 = vmul.f32 %v189, %v189
    %v199 = vsel %vm54, %v198, 0.0
    %200 = vadd.xlane.f32.xlu0 %v199
    %v201 = vpop.xlane.xlu0 %200
    %v202 = vmul.f32 %v201, %v101
    %v203 = vmul.f32 %v197, %v197
    %v204 = vsub.f32 %v202, %v203
    %v205 = vsub.f32 %v189, %v197
    %v206 = vadd.f32 %v204, 1e-05
    %v207 = vrsqrt.pop %v206
    %v208 = vmul.f32 %v205, %v207
    %v209 = vlaneseq
    %v210 = vshrl.u32 %v209, 7
    %v211 = vsub.s32 1, %v210
    %v212 = vrot.slane %v129, %v211
    %v213 = vmul.f32 %v208, %v212
    %v214 = vlaneseq
    %v215 = vshrl.u32 %v214, 7
    %v216 = vsub.s32 2, %v215
    %v217 = vrot.slane %v129, %v216
    %v218 = vadd.f32 %v213, %v217
    %vm219 = vcmp.ge.f32.partialorder %v218, 0.0
    %v220 = vmul.f32 %v218, 0.01
    %v221 = vsel %vm219, %v218, %v220
    %v222 = vpack.c.bf16 %v221, %v221
    %s223 = scalar_lea.vmem %s3, 8
    %v224 = vld [vmem:[%s223] sm:$0x7]
    %s225 = scalar_lea.vmem %s1, 32
    %v226 = vld [vmem:[%s225] sm:$0xf]
    %v227 = vld [vmem:[%s225 + $0x4] sm:$0xf]
    %v228 = vld [vmem:[%s225 + $0x8] sm:$0xf]
    %v229 = vld [vmem:[%s225 + $0xc] sm:$0xf]
    %v230 = vlaneseq
    %v231 = vshrl.u32 %v230, 7
    %v232 = vsub.s32 0, %v231
    %v233 = vrot.slane %v224, %v232
    %v238 = vunpack.c.l.b16 %v226
    %v239 = vunpack.c.l.b16 %v227
    %v240 = vunpack.c.l.b16 %v228
    %v241 = vunpack.c.l.b16 %v229
    %v242 = vpack.c.b16 %v239, %v238
    %v243 = vpack.c.b16 %v241, %v240
    %v247 = vsel %vm54, %v222, 0
    %249 = vmatprep.subr.bf16.mxu0 0
    %250 = vmatpush1.bf16.msra.mxu0 0
    %251 = vmatprep.subr.bf16.mxu0 0
    %252 = vmatpush1.bf16.msra.mxu0 0
    %253 = vmatprep.subr.bf16.mxu0 0
    %254 = vmatpush1.bf16.msra.mxu0 0
    %255 = vmatprep.subr.bf16.mxu0 0
    %256 = vmatpush1.bf16.msra.mxu0 0
    %257 = vmatprep.subr.bf16.mxu0 0
    %258 = vmatpush1.bf16.msra.mxu0 0
    %259 = vmatprep.subr.bf16.mxu0 0
    %260 = vmatpush1.bf16.msra.mxu0 0
    %261 = vmatprep.subr.bf16.mxu0 0
    %262 = vmatpush1.bf16.msra.mxu0 %v243
    %263 = vmatprep.subr.bf16.mxu0 0
    %264 = vmatpush1.bf16.msra.mxu0 %v242
    %265 = vmatprep.subr.bf16.mxu0 0
    %266 = vmatpush2.bf16.msra.mxu0 0
    %267 = vmatprep.subr.bf16.mxu0 0
    %268 = vmatpush2.bf16.msra.mxu0 0
    %269 = vmatprep.subr.bf16.mxu0 0
    %270 = vmatpush2.bf16.msra.mxu0 0
    %271 = vmatprep.subr.bf16.mxu0 0
    %272 = vmatpush2.bf16.msra.mxu0 0
    %273 = vmatprep.subr.bf16.mxu0 0
    %274 = vmatpush2.bf16.msra.mxu0 0
    %275 = vmatprep.subr.bf16.mxu0 0
    %276 = vmatpush2.bf16.msra.mxu0 0
    %277 = vmatprep.subr.bf16.mxu0 0
    %278 = vmatpush2.bf16.msra.mxu0 0
    %279 = vmatprep.subr.bf16.mxu0 0
    %280 = vmatpush2.bf16.msra.mxu0 0
    %281 = vmatprep.mubr.bf16.mxu0 0
    %282 = vmatmul.mubr.bf16.gmra.mxu0 %v247
    %v283 = vpop.f32.mrf.mxu0
    %v284 = vadd.f32 %v233, %v283
    %v285 = vpop.f32.mrf.mxu0
    %v286 = vpop.f32.mrf.mxu0
    %v287 = vpop.f32.mrf.mxu0
    %288 = vdwg.mxu0
    %v289 = vsel %vm54, %v284, 0.0
    %290 = vadd.xlane.f32.xlu0 %v289
    %v291 = vpop.xlane.xlu0 %290
    %v292 = vmul.f32 %v291, %v101
    %v293 = vmul.f32 %v284, %v284
    %v294 = vsel %vm54, %v293, 0.0
    %295 = vadd.xlane.f32.xlu0 %v294
    %v296 = vpop.xlane.xlu0 %295
    %v297 = vmul.f32 %v296, %v101
    %v298 = vmul.f32 %v292, %v292
    %v299 = vsub.f32 %v297, %v298
    %v300 = vsub.f32 %v284, %v292
    %v301 = vadd.f32 %v299, 1e-05
    %v302 = vrsqrt.pop %v301
    %v303 = vmul.f32 %v300, %v302
    %v304 = vlaneseq
    %v305 = vshrl.u32 %v304, 7
    %v306 = vsub.s32 1, %v305
    %v307 = vrot.slane %v224, %v306
    %v308 = vmul.f32 %v303, %v307
    %v309 = vlaneseq
    %v310 = vshrl.u32 %v309, 7
    %v311 = vsub.s32 2, %v310
    %v312 = vrot.slane %v224, %v311
    %v313 = vadd.f32 %v308, %v312
    %vm314 = vcmp.ge.f32.partialorder %v313, 0.0
    %v315 = vmul.f32 %v313, 0.01
    %v316 = vsel %vm314, %v313, %v315
    %v317 = vpack.c.bf16 %v316, %v316
    %s318 = scalar_lea.vmem %s3, 12
    %v319 = vld [vmem:[%s318] sm:$0x7]
    %s320 = scalar_lea.vmem %s1, 48
    %v321 = vld [vmem:[%s320] sm:$0xf]
    %v322 = vld [vmem:[%s320 + $0x4] sm:$0xf]
    %v323 = vld [vmem:[%s320 + $0x8] sm:$0xf]
    %v324 = vld [vmem:[%s320 + $0xc] sm:$0xf]
    %v325 = vlaneseq
    %v326 = vshrl.u32 %v325, 7
    %v327 = vsub.s32 0, %v326
    %v328 = vrot.slane %v319, %v327
    %v333 = vunpack.c.l.b16 %v321
    %v334 = vunpack.c.l.b16 %v322
    %v335 = vunpack.c.l.b16 %v323
    %v336 = vunpack.c.l.b16 %v324
    %v337 = vpack.c.b16 %v334, %v333
    %v338 = vpack.c.b16 %v336, %v335
    %v342 = vsel %vm54, %v317, 0
    %344 = vmatprep.subr.bf16.mxu0 0
    %345 = vmatpush1.bf16.msra.mxu0 0
    %346 = vmatprep.subr.bf16.mxu0 0
    %347 = vmatpush1.bf16.msra.mxu0 0
    %348 = vmatprep.subr.bf16.mxu0 0
    %349 = vmatpush1.bf16.msra.mxu0 0
    %350 = vmatprep.subr.bf16.mxu0 0
    %351 = vmatpush1.bf16.msra.mxu0 0
    %352 = vmatprep.subr.bf16.mxu0 0
    %353 = vmatpush1.bf16.msra.mxu0 0
    %354 = vmatprep.subr.bf16.mxu0 0
    %355 = vmatpush1.bf16.msra.mxu0 0
    %356 = vmatprep.subr.bf16.mxu0 0
    %357 = vmatpush1.bf16.msra.mxu0 %v338
    %358 = vmatprep.subr.bf16.mxu0 0
    %359 = vmatpush1.bf16.msra.mxu0 %v337
    %360 = vmatprep.subr.bf16.mxu0 0
    %361 = vmatpush2.bf16.msra.mxu0 0
    %362 = vmatprep.subr.bf16.mxu0 0
    %363 = vmatpush2.bf16.msra.mxu0 0
    %364 = vmatprep.subr.bf16.mxu0 0
    %365 = vmatpush2.bf16.msra.mxu0 0
    %366 = vmatprep.subr.bf16.mxu0 0
    %367 = vmatpush2.bf16.msra.mxu0 0
    %368 = vmatprep.subr.bf16.mxu0 0
    %369 = vmatpush2.bf16.msra.mxu0 0
    %370 = vmatprep.subr.bf16.mxu0 0
    %371 = vmatpush2.bf16.msra.mxu0 0
    %372 = vmatprep.subr.bf16.mxu0 0
    %373 = vmatpush2.bf16.msra.mxu0 0
    %374 = vmatprep.subr.bf16.mxu0 0
    %375 = vmatpush2.bf16.msra.mxu0 0
    %376 = vmatprep.mubr.bf16.mxu0 0
    %377 = vmatmul.mubr.bf16.gmra.mxu0 %v342
    %v378 = vpop.f32.mrf.mxu0
    %v379 = vadd.f32 %v328, %v378
    %v380 = vpop.f32.mrf.mxu0
    %v381 = vpop.f32.mrf.mxu0
    %v382 = vpop.f32.mrf.mxu0
    %383 = vdwg.mxu0
    %v384 = vsel %vm54, %v379, 0.0
    %385 = vadd.xlane.f32.xlu0 %v384
    %v386 = vpop.xlane.xlu0 %385
    %v387 = vmul.f32 %v386, %v101
    %v388 = vmul.f32 %v379, %v379
    %v389 = vsel %vm54, %v388, 0.0
    %390 = vadd.xlane.f32.xlu0 %v389
    %v391 = vpop.xlane.xlu0 %390
    %v392 = vmul.f32 %v391, %v101
    %v393 = vmul.f32 %v387, %v387
    %v394 = vsub.f32 %v392, %v393
    %v395 = vsub.f32 %v379, %v387
    %v396 = vadd.f32 %v394, 1e-05
    %v397 = vrsqrt.pop %v396
    %v398 = vmul.f32 %v395, %v397
    %v399 = vlaneseq
    %v400 = vshrl.u32 %v399, 7
    %v401 = vsub.s32 1, %v400
    %v402 = vrot.slane %v319, %v401
    %v403 = vmul.f32 %v398, %v402
    %v404 = vlaneseq
    %v405 = vshrl.u32 %v404, 7
    %v406 = vsub.s32 2, %v405
    %v407 = vrot.slane %v319, %v406
    %v408 = vadd.f32 %v403, %v407
    %vm409 = vcmp.ge.f32.partialorder %v408, 0.0
    %v410 = vmul.f32 %v408, 0.01
    %v411 = vsel %vm409, %v408, %v410
    %v412 = vpack.c.bf16 %v411, %v411
    %v415 = vsel %vm54, %v412, 0
    %s416 = scalar_lea.vmem %s3, 16
    %v417 = vld [vmem:[%s416] sm:$0x7]
    %v418 = vld [vmem:[#allocation2] sm:$0xf]
    %v419 = vld [vmem:[#allocation2 + $0x4] sm:$0xf]
    %v420 = vld [vmem:[#allocation2 + $0x8] sm:$0xf]
    %v421 = vld [vmem:[#allocation2 + $0xc] sm:$0xf]
    %v422 = vld [vmem:[#allocation2 + $0x10] sm:$0xf]
    %v423 = vld [vmem:[#allocation2 + $0x14] sm:$0xf]
    %v424 = vld [vmem:[#allocation2 + $0x18] sm:$0xf]
    %v425 = vld [vmem:[#allocation2 + $0x1c] sm:$0xf]
    %v426 = vlaneseq
    %v427 = vshrl.u32 %v426, 7
    %v428 = vsub.s32 0, %v427
    %v429 = vrot.slane %v417, %v428
    %v438 = vunpack.c.l.b16 %v418
    %v439 = vunpack.c.l.b16 %v419
    %v440 = vunpack.c.l.b16 %v420
    %v441 = vunpack.c.l.b16 %v421
    %v442 = vunpack.c.l.b16 %v422
    %v443 = vunpack.c.l.b16 %v423
    %v444 = vunpack.c.l.b16 %v424
    %v445 = vunpack.c.l.b16 %v425
    %v446 = vpack.c.b16 %v439, %v438
    %v447 = vpack.c.b16 %v441, %v440
    %v448 = vpack.c.b16 %v443, %v442
    %v449 = vpack.c.b16 %v445, %v444
    %vm454 = vcmask 523264
    %v455 = vsel %vm454, %v415, 0
    %457 = vmatprep.subr.bf16.mxu0 0
    %458 = vmatpush1.bf16.msra.mxu0 0
    %459 = vmatprep.subr.bf16.mxu0 0
    %460 = vmatpush1.bf16.msra.mxu0 0
    %461 = vmatprep.subr.bf16.mxu0 0
    %462 = vmatpush1.bf16.msra.mxu0 0
    %463 = vmatprep.subr.bf16.mxu0 0
    %464 = vmatpush1.bf16.msra.mxu0 0
    %465 = vmatprep.subr.bf16.mxu0 0
    %466 = vmatpush1.bf16.msra.mxu0 %v449
    %467 = vmatprep.subr.bf16.mxu0 0
    %468 = vmatpush1.bf16.msra.mxu0 %v448
    %469 = vmatprep.subr.bf16.mxu0 0
    %470 = vmatpush1.bf16.msra.mxu0 %v447
    %471 = vmatprep.subr.bf16.mxu0 0
    %472 = vmatpush1.bf16.msra.mxu0 %v446
    %473 = vmatprep.subr.bf16.mxu0 0
    %474 = vmatpush2.bf16.msra.mxu0 0
    %475 = vmatprep.subr.bf16.mxu0 0
    %476 = vmatpush2.bf16.msra.mxu0 0
    %477 = vmatprep.subr.bf16.mxu0 0
    %478 = vmatpush2.bf16.msra.mxu0 0
    %479 = vmatprep.subr.bf16.mxu0 0
    %480 = vmatpush2.bf16.msra.mxu0 0
    %481 = vmatprep.subr.bf16.mxu0 0
    %482 = vmatpush2.bf16.msra.mxu0 0
    %483 = vmatprep.subr.bf16.mxu0 0
    %484 = vmatpush2.bf16.msra.mxu0 0
    %485 = vmatprep.subr.bf16.mxu0 0
    %486 = vmatpush2.bf16.msra.mxu0 0
    %487 = vmatprep.subr.bf16.mxu0 0
    %488 = vmatpush2.bf16.msra.mxu0 0
    %489 = vmatprep.mubr.bf16.mxu0 0
    %490 = vmatmul.mubr.bf16.gmra.mxu0 %v455
    %v491 = vpop.f32.mrf.mxu0
    %v492 = vadd.f32 %v429, %v491
    %v493 = vpop.f32.mrf.mxu0
    %v494 = vpop.f32.mrf.mxu0
    %v495 = vpop.f32.mrf.mxu0
    %496 = vdwg.mxu0
    %v497 = vsel %vm54, %v492, 0.0
    %498 = vadd.xlane.f32.xlu0 %v497
    %v499 = vpop.xlane.xlu0 %498
    %v500 = vmul.f32 %v499, %v101
    %v501 = vmul.f32 %v492, %v492
    %v502 = vsel %vm54, %v501, 0.0
    %503 = vadd.xlane.f32.xlu0 %v502
    %v504 = vpop.xlane.xlu0 %503
    %v505 = vmul.f32 %v504, %v101
    %v506 = vmul.f32 %v500, %v500
    %v507 = vsub.f32 %v505, %v506
    %v508 = vsub.f32 %v492, %v500
    %v509 = vadd.f32 %v507, 1e-05
    %v510 = vrsqrt.pop %v509
    %v511 = vmul.f32 %v508, %v510
    %v512 = vlaneseq
    %v513 = vshrl.u32 %v512, 7
    %v514 = vsub.s32 1, %v513
    %v515 = vrot.slane %v417, %v514
    %v516 = vmul.f32 %v511, %v515
    %v517 = vlaneseq
    %v518 = vshrl.u32 %v517, 7
    %v519 = vsub.s32 2, %v518
    %v520 = vrot.slane %v417, %v519
    %v521 = vadd.f32 %v516, %v520
    %vm522 = vcmp.ge.f32.partialorder %v521, 0.0
    %v523 = vmul.f32 %v521, 0.01
    %v524 = vsel %vm522, %v521, %v523
    %526 = vrot.lane.b32.xlu0 %v492, 96
    %v527 = vpop.permute.xlu0 %526
    %v529 = vsel %vm54, %v527, 0.0
    %530 = vadd.xlane.f32.xlu0 %v529
    %v531 = vpop.xlane.xlu0 %530
    %v532 = vmul.f32 %v531, %v101
    %534 = vrot.lane.b32.xlu0 %v501, 96
    %v535 = vpop.permute.xlu0 %534
    %v537 = vsel %vm54, %v535, 0.0
    %538 = vadd.xlane.f32.xlu0 %v537
    %v539 = vpop.xlane.xlu0 %538
    %v540 = vmul.f32 %v539, %v101
    %v541 = vmul.f32 %v532, %v532
    %v542 = vsub.f32 %v540, %v541
    %v543 = vsub.f32 %v492, %v532
    %v544 = vadd.f32 %v542, 1e-05
    %v545 = vrsqrt.pop %v544
    %v546 = vmul.f32 %v543, %v545
    %v547 = vmul.f32 %v546, %v515
    %v548 = vadd.f32 %v547, %v520
    %vm549 = vcmp.ge.f32.partialorder %v548, 0.0
    %v550 = vmul.f32 %v548, 0.01
    %v551 = vsel %vm549, %v548, %v550
    %v552 = vsel %vm54, %v524, %v551
    %v553 = vpack.c.bf16 %v552, %v552
    %s554 = scalar_lea.vmem %s3, 20
    %v555 = vld [vmem:[%s554] sm:$0x7]
    %s556 = scalar_lea.vmem [#allocation2], 32
    %v557 = vld [vmem:[%s556] sm:$0xf]
    %v558 = vld [vmem:[%s556 + $0x4] sm:$0xf]
    %v559 = vld [vmem:[%s556 + $0x8] sm:$0xf]
    %v560 = vld [vmem:[%s556 + $0xc] sm:$0xf]
    %v561 = vld [vmem:[%s556 + $0x10] sm:$0xf]
    %v562 = vld [vmem:[%s556 + $0x14] sm:$0xf]
    %v563 = vld [vmem:[%s556 + $0x18] sm:$0xf]
    %v564 = vld [vmem:[%s556 + $0x1c] sm:$0xf]
    %v565 = vlaneseq
    %v566 = vshrl.u32 %v565, 7
    %v567 = vsub.s32 0, %v566
    %v568 = vrot.slane %v555, %v567
    %v577 = vunpack.c.l.b16 %v557
    %v578 = vunpack.c.l.b16 %v558
    %v579 = vunpack.c.l.b16 %v559
    %v580 = vunpack.c.l.b16 %v560
    %v581 = vunpack.c.l.b16 %v561
    %v582 = vunpack.c.l.b16 %v562
    %v583 = vunpack.c.l.b16 %v563
    %v584 = vunpack.c.l.b16 %v564
    %v585 = vpack.c.b16 %v578, %v577
    %v586 = vpack.c.b16 %v580, %v579
    %v587 = vpack.c.b16 %v582, %v581
    %v588 = vpack.c.b16 %v584, %v583
    %v594 = vsel %vm454, %v553, 0
    %596 = vmatprep.subr.bf16.mxu0 0
    %597 = vmatpush1.bf16.msra.mxu0 0
    %598 = vmatprep.subr.bf16.mxu0 0
    %599 = vmatpush1.bf16.msra.mxu0 0
    %600 = vmatprep.subr.bf16.mxu0 0
    %601 = vmatpush1.bf16.msra.mxu0 0
    %602 = vmatprep.subr.bf16.mxu0 0
    %603 = vmatpush1.bf16.msra.mxu0 0
    %604 = vmatprep.subr.bf16.mxu0 0
    %605 = vmatpush1.bf16.msra.mxu0 %v588
    %606 = vmatprep.subr.bf16.mxu0 0
    %607 = vmatpush1.bf16.msra.mxu0 %v587
    %608 = vmatprep.subr.bf16.mxu0 0
    %609 = vmatpush1.bf16.msra.mxu0 %v586
    %610 = vmatprep.subr.bf16.mxu0 0
    %611 = vmatpush1.bf16.msra.mxu0 %v585
    %612 = vmatprep.subr.bf16.mxu0 0
    %613 = vmatpush2.bf16.msra.mxu0 0
    %614 = vmatprep.subr.bf16.mxu0 0
    %615 = vmatpush2.bf16.msra.mxu0 0
    %616 = vmatprep.subr.bf16.mxu0 0
    %617 = vmatpush2.bf16.msra.mxu0 0
    %618 = vmatprep.subr.bf16.mxu0 0
    %619 = vmatpush2.bf16.msra.mxu0 0
    %620 = vmatprep.subr.bf16.mxu0 0
    %621 = vmatpush2.bf16.msra.mxu0 0
    %622 = vmatprep.subr.bf16.mxu0 0
    %623 = vmatpush2.bf16.msra.mxu0 0
    %624 = vmatprep.subr.bf16.mxu0 0
    %625 = vmatpush2.bf16.msra.mxu0 0
    %626 = vmatprep.subr.bf16.mxu0 0
    %627 = vmatpush2.bf16.msra.mxu0 0
    %628 = vmatprep.mubr.bf16.mxu0 0
    %629 = vmatmul.mubr.bf16.gmra.mxu0 %v594
    %v630 = vpop.f32.mrf.mxu0
    %v631 = vadd.f32 %v568, %v630
    %v632 = vpop.f32.mrf.mxu0
    %v633 = vpop.f32.mrf.mxu0
    %v634 = vpop.f32.mrf.mxu0
    %635 = vdwg.mxu0
    %v636 = vsel %vm54, %v631, 0.0
    %637 = vadd.xlane.f32.xlu0 %v636
    %v638 = vpop.xlane.xlu0 %637
    %v639 = vmul.f32 %v638, %v101
    %v640 = vmul.f32 %v631, %v631
    %v641 = vsel %vm54, %v640, 0.0
    %642 = vadd.xlane.f32.xlu0 %v641
    %v643 = vpop.xlane.xlu0 %642
    %v644 = vmul.f32 %v643, %v101
    %v645 = vmul.f32 %v639, %v639
    %v646 = vsub.f32 %v644, %v645
    %v647 = vsub.f32 %v631, %v639
    %v648 = vadd.f32 %v646, 1e-05
    %v649 = vrsqrt.pop %v648
    %v650 = vmul.f32 %v647, %v649
    %v651 = vlaneseq
    %v652 = vshrl.u32 %v651, 7
    %v653 = vsub.s32 1, %v652
    %v654 = vrot.slane %v555, %v653
    %v655 = vmul.f32 %v650, %v654
    %v656 = vlaneseq
    %v657 = vshrl.u32 %v656, 7
    %v658 = vsub.s32 2, %v657
    %v659 = vrot.slane %v555, %v658
    %v660 = vadd.f32 %v655, %v659
    %vm661 = vcmp.ge.f32.partialorder %v660, 0.0
    %v662 = vmul.f32 %v660, 0.01
    %v663 = vsel %vm661, %v660, %v662
    %665 = vrot.lane.b32.xlu0 %v631, 96
    %v666 = vpop.permute.xlu0 %665
    %v668 = vsel %vm54, %v666, 0.0
    %669 = vadd.xlane.f32.xlu0 %v668
    %v670 = vpop.xlane.xlu0 %669
    %v671 = vmul.f32 %v670, %v101
    %673 = vrot.lane.b32.xlu0 %v640, 96
    %v674 = vpop.permute.xlu0 %673
    %v676 = vsel %vm54, %v674, 0.0
    %677 = vadd.xlane.f32.xlu0 %v676
    %v678 = vpop.xlane.xlu0 %677
    %v679 = vmul.f32 %v678, %v101
    %v680 = vmul.f32 %v671, %v671
    %v681 = vsub.f32 %v679, %v680
    %v682 = vsub.f32 %v631, %v671
    %v683 = vadd.f32 %v681, 1e-05
    %v684 = vrsqrt.pop %v683
    %v685 = vmul.f32 %v682, %v684
    %v686 = vmul.f32 %v685, %v654
    %v687 = vadd.f32 %v686, %v659
    %vm688 = vcmp.ge.f32.partialorder %v687, 0.0
    %v689 = vmul.f32 %v687, 0.01
    %v690 = vsel %vm688, %v687, %v689
    %v691 = vsel %vm54, %v663, %v690
    %v692 = vpack.c.bf16 %v691, %v691
    %s693 = scalar_lea.vmem %s3, 24
    %v694 = vld [vmem:[%s693] sm:$0x7]
    %s695 = scalar_lea.vmem [#allocation2], 64
    %v696 = vld [vmem:[%s695] sm:$0xf]
    %v697 = vld [vmem:[%s695 + $0x4] sm:$0xf]
    %v698 = vld [vmem:[%s695 + $0x8] sm:$0xf]
    %v699 = vld [vmem:[%s695 + $0xc] sm:$0xf]
    %v700 = vld [vmem:[%s695 + $0x10] sm:$0xf]
    %v701 = vld [vmem:[%s695 + $0x14] sm:$0xf]
    %v702 = vld [vmem:[%s695 + $0x18] sm:$0xf]
    %v703 = vld [vmem:[%s695 + $0x1c] sm:$0xf]
    %v704 = vlaneseq
    %v705 = vshrl.u32 %v704, 7
    %v706 = vsub.s32 0, %v705
    %v707 = vrot.slane %v694, %v706
    %v716 = vunpack.c.l.b16 %v696
    %v717 = vunpack.c.l.b16 %v697
    %v718 = vunpack.c.l.b16 %v698
    %v719 = vunpack.c.l.b16 %v699
    %v720 = vunpack.c.l.b16 %v700
    %v721 = vunpack.c.l.b16 %v701
    %v722 = vunpack.c.l.b16 %v702
    %v723 = vunpack.c.l.b16 %v703
    %v724 = vpack.c.b16 %v717, %v716
    %v725 = vpack.c.b16 %v719, %v718
    %v726 = vpack.c.b16 %v721, %v720
    %v727 = vpack.c.b16 %v723, %v722
    %v733 = vsel %vm454, %v692, 0
    %735 = vmatprep.subr.bf16.mxu0 0
    %736 = vmatpush1.bf16.msra.mxu0 0
    %737 = vmatprep.subr.bf16.mxu0 0
    %738 = vmatpush1.bf16.msra.mxu0 0
    %739 = vmatprep.subr.bf16.mxu0 0
    %740 = vmatpush1.bf16.msra.mxu0 0
    %741 = vmatprep.subr.bf16.mxu0 0
    %742 = vmatpush1.bf16.msra.mxu0 0
    %743 = vmatprep.subr.bf16.mxu0 0
    %744 = vmatpush1.bf16.msra.mxu0 %v727
    %745 = vmatprep.subr.bf16.mxu0 0
    %746 = vmatpush1.bf16.msra.mxu0 %v726
    %747 = vmatprep.subr.bf16.mxu0 0
    %748 = vmatpush1.bf16.msra.mxu0 %v725
    %749 = vmatprep.subr.bf16.mxu0 0
    %750 = vmatpush1.bf16.msra.mxu0 %v724
    %751 = vmatprep.subr.bf16.mxu0 0
    %752 = vmatpush2.bf16.msra.mxu0 0
    %753 = vmatprep.subr.bf16.mxu0 0
    %754 = vmatpush2.bf16.msra.mxu0 0
    %755 = vmatprep.subr.bf16.mxu0 0
    %756 = vmatpush2.bf16.msra.mxu0 0
    %757 = vmatprep.subr.bf16.mxu0 0
    %758 = vmatpush2.bf16.msra.mxu0 0
    %759 = vmatprep.subr.bf16.mxu0 0
    %760 = vmatpush2.bf16.msra.mxu0 0
    %761 = vmatprep.subr.bf16.mxu0 0
    %762 = vmatpush2.bf16.msra.mxu0 0
    %763 = vmatprep.subr.bf16.mxu0 0
    %764 = vmatpush2.bf16.msra.mxu0 0
    %765 = vmatprep.subr.bf16.mxu0 0
    %766 = vmatpush2.bf16.msra.mxu0 0
    %767 = vmatprep.mubr.bf16.mxu0 0
    %768 = vmatmul.mubr.bf16.gmra.mxu0 %v733
    %v769 = vpop.f32.mrf.mxu0
    %v770 = vadd.f32 %v707, %v769
    %v771 = vpop.f32.mrf.mxu0
    %v772 = vpop.f32.mrf.mxu0
    %v773 = vpop.f32.mrf.mxu0
    %774 = vdwg.mxu0
    %v775 = vsel %vm54, %v770, 0.0
    %776 = vadd.xlane.f32.xlu0 %v775
    %v777 = vpop.xlane.xlu0 %776
    %v778 = vmul.f32 %v777, %v101
    %v779 = vmul.f32 %v770, %v770
    %v780 = vsel %vm54, %v779, 0.0
    %781 = vadd.xlane.f32.xlu0 %v780
    %v782 = vpop.xlane.xlu0 %781
    %v783 = vmul.f32 %v782, %v101
    %v784 = vmul.f32 %v778, %v778
    %v785 = vsub.f32 %v783, %v784
    %v786 = vsub.f32 %v770, %v778
    %v787 = vadd.f32 %v785, 1e-05
    %v788 = vrsqrt.pop %v787
    %v789 = vmul.f32 %v786, %v788
    %v790 = vlaneseq
    %v791 = vshrl.u32 %v790, 7
    %v792 = vsub.s32 1, %v791
    %v793 = vrot.slane %v694, %v792
    %v794 = vmul.f32 %v789, %v793
    %v795 = vlaneseq
    %v796 = vshrl.u32 %v795, 7
    %v797 = vsub.s32 2, %v796
    %v798 = vrot.slane %v694, %v797
    %v799 = vadd.f32 %v794, %v798
    %vm800 = vcmp.ge.f32.partialorder %v799, 0.0
    %v801 = vmul.f32 %v799, 0.01
    %v802 = vsel %vm800, %v799, %v801
    %804 = vrot.lane.b32.xlu0 %v770, 96
    %v805 = vpop.permute.xlu0 %804
    %v807 = vsel %vm54, %v805, 0.0
    %808 = vadd.xlane.f32.xlu0 %v807
    %v809 = vpop.xlane.xlu0 %808
    %v810 = vmul.f32 %v809, %v101
    %812 = vrot.lane.b32.xlu0 %v779, 96
    %v813 = vpop.permute.xlu0 %812
    %v815 = vsel %vm54, %v813, 0.0
    %816 = vadd.xlane.f32.xlu0 %v815
    %v817 = vpop.xlane.xlu0 %816
    %v818 = vmul.f32 %v817, %v101
    %v819 = vmul.f32 %v810, %v810
    %v820 = vsub.f32 %v818, %v819
    %v821 = vsub.f32 %v770, %v810
    %v822 = vadd.f32 %v820, 1e-05
    %v823 = vrsqrt.pop %v822
    %v824 = vmul.f32 %v821, %v823
    %v825 = vmul.f32 %v824, %v793
    %v826 = vadd.f32 %v825, %v798
    %vm827 = vcmp.ge.f32.partialorder %v826, 0.0
    %v828 = vmul.f32 %v826, 0.01
    %v829 = vsel %vm827, %v826, %v828
    %v830 = vsel %vm54, %v802, %v829
    %v831 = vpack.c.bf16 %v830, %v830
    %s832 = scalar_lea.vmem [#allocation2], 96
    %v833 = vld [vmem:[%s832] sm:$0xf]
    %v834 = vld [vmem:[%s832 + $0x4] sm:$0xf]
    %v835 = vld [vmem:[%s832 + $0x8] sm:$0xf]
    %v836 = vld [vmem:[%s832 + $0xc] sm:$0xf]
    %v837 = vld [vmem:[%s832 + $0x10] sm:$0xf]
    %v838 = vld [vmem:[%s832 + $0x14] sm:$0xf]
    %v839 = vld [vmem:[%s832 + $0x18] sm:$0xf]
    %v840 = vld [vmem:[%s832 + $0x1c] sm:$0xf]
    %s841 = scalar_lea.vmem %s3, 28
    %v842 = vld [vmem:[%s841] sm:$0x1]
    %v843 = vlaneseq
    %v844 = vshrl.u32 %v843, 7
    %v845 = vsub.s32 0, %v844
    %v846 = vrot.slane %v842, %v845
    %v855 = vunpack.c.l.b16 %v833
    %v856 = vunpack.c.l.b16 %v834
    %v857 = vunpack.c.l.b16 %v835
    %v858 = vunpack.c.l.b16 %v836
    %v859 = vunpack.c.l.b16 %v837
    %v860 = vunpack.c.l.b16 %v838
    %v861 = vunpack.c.l.b16 %v839
    %v862 = vunpack.c.l.b16 %v840
    %v863 = vpack.c.b16 %v856, %v855
    %v864 = vpack.c.b16 %v858, %v857
    %v865 = vpack.c.b16 %v860, %v859
    %v866 = vpack.c.b16 %v862, %v861
    %v872 = vsel %vm454, %v831, 0
    %874 = vmatprep.subr.bf16.mxu0 0
    %875 = vmatpush1.bf16.msra.mxu0 0
    %876 = vmatprep.subr.bf16.mxu0 0
    %877 = vmatpush1.bf16.msra.mxu0 0
    %878 = vmatprep.subr.bf16.mxu0 0
    %879 = vmatpush1.bf16.msra.mxu0 0
    %880 = vmatprep.subr.bf16.mxu0 0
    %881 = vmatpush1.bf16.msra.mxu0 0
    %882 = vmatprep.subr.bf16.mxu0 0
    %883 = vmatpush1.bf16.msra.mxu0 %v866
    %884 = vmatprep.subr.bf16.mxu0 0
    %885 = vmatpush1.bf16.msra.mxu0 %v865
    %886 = vmatprep.subr.bf16.mxu0 0
    %887 = vmatpush1.bf16.msra.mxu0 %v864
    %888 = vmatprep.subr.bf16.mxu0 0
    %889 = vmatpush1.bf16.msra.mxu0 %v863
    %890 = vmatprep.subr.bf16.mxu0 0
    %891 = vmatpush2.bf16.msra.mxu0 0
    %892 = vmatprep.subr.bf16.mxu0 0
    %893 = vmatpush2.bf16.msra.mxu0 0
    %894 = vmatprep.subr.bf16.mxu0 0
    %895 = vmatpush2.bf16.msra.mxu0 0
    %896 = vmatprep.subr.bf16.mxu0 0
    %897 = vmatpush2.bf16.msra.mxu0 0
    %898 = vmatprep.subr.bf16.mxu0 0
    %899 = vmatpush2.bf16.msra.mxu0 0
    %900 = vmatprep.subr.bf16.mxu0 0
    %901 = vmatpush2.bf16.msra.mxu0 0
    %902 = vmatprep.subr.bf16.mxu0 0
    %903 = vmatpush2.bf16.msra.mxu0 0
    %904 = vmatprep.subr.bf16.mxu0 0
    %905 = vmatpush2.bf16.msra.mxu0 0
    %906 = vmatprep.mubr.bf16.mxu0 0
    %907 = vmatmul.mubr.bf16.gmra.mxu0 %v872
    %v908 = vpop.f32.mrf.mxu0
    %v909 = vadd.f32 %v846, %v908
    %v910 = vpop.f32.mrf.mxu0
    %v911 = vpop.f32.mrf.mxu0
    %v912 = vpop.f32.mrf.mxu0
    %913 = vdwg.mxu0
    %914 = vst.msk [vmem:[%s4] sm:$0xff] %vm454, %v909
    // Predicated region
    $region22: #{actor_critic_forward.1} parent=1 // pred_check
      _
    $region23: #{actor_critic_forward.1} parent=1 // pred_check_branch
      %916 = sbr.rel (0) target = $region25
    $region24: #{actor_critic_forward.1} parent=1 // pred_region
      _
    $region25: #{actor_critic_forward.1} parent=1 // pred_fallthru
      _
    // Predicated region
    $region26: #{actor_critic_forward.1} parent=1 // pred_check
      _
    $region27: #{actor_critic_forward.1} parent=1 // pred_check_branch
      %918 = sbr.rel (0) target = $region29
    $region28: #{actor_critic_forward.1} parent=1 // pred_region
      _
    $region29: #{actor_critic_forward.1} parent=1 // pred_fallthru
      _
    %919 = vsyncpa [#allocation3], 1

</llo_original>
